<compile_context>
chip_gen: v7x
topology: tpu7x:2x2x1
jax: 0.10.0
libtpu: 0.0.40
codegen_flags: <defaults>
</compile_context>

<pallas_src>
import functools

import jax
import jax.numpy as jnp
from jax import lax
from jax.experimental import pallas as pl
from jax.experimental.pallas import tpu as pltpu


def _round_up(x, m):
    return ((x + m - 1) // m) * m


def _mlp_kernel(x_ref, w1_ref, w2_ref, o_ref, *, activation_type, num_outputs):
    """One batch tile of the MLP forward pass.

    x_ref  : (bm, num_inputs)          VMEM  input tile (streamed over the grid)
    w1_ref : (num_inputs, num_hidden)  VMEM  lin1.weight^T (pre-transposed, resident)
    w2_ref : (num_hidden, n_out_pad)   VMEM  lin2.weight^T zero-padded lane-dense, resident
    o_ref  : (bm, n_out_pad)           VMEM  lane-dense softmax output tile
    """
    # lin1: x @ w1^T (K-major weights -> natural MXU path), f32 accumulation.
    pre_h = jnp.dot(x_ref[...], w1_ref[...], preferred_element_type=jnp.float32)

    act = activation_type.lower()
    if act == "sigmoid":
        h = jax.nn.sigmoid(pre_h)
    elif act == "tanh":
        h = jnp.tanh(pre_h)
    elif act == "relu":
        h = jnp.maximum(pre_h, 0.0)
    elif act == "identity":
        h = pre_h
    else:
        raise NotImplementedError(
            f"{activation_type} activation type not recognized.")

    # lin2: h @ w2^T into a lane-dense (bm, n_out_pad) slab.
    logits = jnp.dot(h.astype(w2_ref.dtype), w2_ref[...],
                     preferred_element_type=jnp.float32)

    # Mask the zero-padded class lanes so the 128-lane softmax is exact.
    n_out_pad = logits.shape[-1]
    if n_out_pad != num_outputs:
        col = lax.broadcasted_iota(jnp.int32, logits.shape, 1)
        logits = jnp.where(col < num_outputs, logits, -jnp.inf)

    # Numerically stable softmax over the class axis (dim=1).
    m = jnp.max(logits, axis=-1, keepdims=True)
    e = jnp.exp(logits - m)
    denom = jnp.sum(e, axis=-1, keepdims=True)
    # EUP reciprocal + multiply; approx=False keeps exact-softmax numerics.
    o_ref[...] = (e * pl.reciprocal(denom, approx=False)).astype(o_ref.dtype)


def _tpu_vmem_capacity_bytes():
    """Physical VMEM per TensorCore; conservative v7x value if the query fails."""
    try:
        cap = getattr(pltpu.get_tpu_info(), "vmem_capacity_bytes", None)
        if cap:
            return int(cap)
    except Exception:
        pass
    return 64 << 20  # v7x per-TC VMEM (the tightest of the three targets)


def mlp_forward(x, w1, w2, *, activation_type="sigmoid", bias=False,
                b1=None, b2=None, block_m=None, out_dtype=None):
    """Pallas wrapper mimicking MultiLayerPerceptron.forward.

    x  : any shape that flattens to (-1, num_inputs)
    w1 : (num_hidden, num_inputs)   -- PyTorch Linear layout
    w2 : (num_outputs, num_hidden)
    """
    num_hidden, num_inputs = w1.shape
    num_outputs = w2.shape[0]
    assert w2.shape[1] == num_hidden

    # TODO(synk): bias=True path not wired into the kernel (module default is bias=False).
    assert not bias and b1 is None and b2 is None

    x2d = x.reshape(-1, num_inputs)  # same semantics as torch X.reshape(-1, num_inputs)
    batch = x2d.shape[0]
    out_dtype = x2d.dtype if out_dtype is None else out_dtype

    # ---- Generation-aware VMEM plan -----------------------------------------
    #   v5e/v6e: 128 MiB physical -> limit ~96 MiB, budget ~88 MiB, big tiles.
    #   v7x    :  64 MiB per TC   -> limit ~48 MiB, budget ~40 MiB, and make the
    #            "parallel" batch axis have >=2 steps for the 2 TensorCores.
    vmem_cap = _tpu_vmem_capacity_bytes()
    vmem_limit = max(min((vmem_cap * 3) // 4, 100 << 20), 32 << 20)
    vmem_budget = max(vmem_limit - (8 << 20), 16 << 20)
    two_tensorcores = vmem_cap <= (64 << 20)  # 64 MiB/TC <=> v7x (2 TCs/chip)
    if block_m is None:
        block_m = 2048 if vmem_cap >= (96 << 20) else 512

    # ---- One-time layout work (cheap XLA ops, outside pallas_call) -----------
    # Pre-transpose to K-major so no per-grid-step transpose of the resident
    # weights is ever emitted, and zero-pad the class axis of lin2 to a
    # lane-dense multiple of 128 (padded lanes are masked to -inf in-kernel).
    # In training code, store the params pre-transposed/pre-padded instead.
    n_out_pad = max(_round_up(num_outputs, 128), 128)
    w1t = w1.T                                                    # (num_inputs, num_hidden)
    w2t = jnp.pad(w2.T, ((0, 0), (0, n_out_pad - num_outputs)))  # (num_hidden, n_out_pad)

    x_itemsize = jnp.dtype(x2d.dtype).itemsize
    w_itemsize = jnp.dtype(w1.dtype).itemsize
    out_itemsize = jnp.dtype(out_dtype).itemsize

    # ---- Batch tile selection -------------------------------------------------
    bm = max(_round_up(min(block_m, _round_up(batch, 8)), 8), 8)
    if two_tensorcores and batch > 8:
        # Guarantee >=2 grid steps so both v7x TensorCores get work.
        bm = min(bm, max(_round_up(pl.cdiv(batch, 2), 8), 8))

    def vmem_est(bm_):
        return (2 * bm_ * num_inputs * x_itemsize              # double-buffered x tiles
                + 2 * bm_ * n_out_pad * out_itemsize           # double-buffered out tiles
                + 2 * bm_ * num_hidden * 4                     # pre_h / h f32 intermediates
                + 2 * bm_ * n_out_pad * 4                      # logits / e f32 intermediates
                # Weights: conservatively budget 2x even though we request
                # single-buffering (covers the fallback path too).
                + 2 * (num_inputs + n_out_pad) * num_hidden * w_itemsize)

    while bm > 8 and vmem_est(bm) > vmem_budget:
        # TODO(synk): if even bm=8 would not fit (very large num_hidden/num_inputs),
        # add an inner "arbitrary" contraction grid axis + f32 accumulator scratch
        # instead of shrinking the batch tile this far.
        bm = max(_round_up(bm // 2, 8), 8)

    # No wrapper-side batch padding: the ragged last block is handled by Pallas
    # (OOB input rows are garbage but softmax is row-independent and OOB output
    # rows are never written back).
    grid = (pl.cdiv(batch, bm),)

    kernel = functools.partial(_mlp_kernel,
                               activation_type=activation_type,
                               num_outputs=num_outputs)

    def build(single_buffer_weights):
        w_kwargs = (dict(pipeline_mode=pl.Buffered(1))
                    if single_buffer_weights else {})
        return pl.pallas_call(
            kernel,
            out_shape=jax.ShapeDtypeStruct((batch, n_out_pad), out_dtype),
            grid_spec=pltpu.PrefetchScalarGridSpec(
                num_scalar_prefetch=0,
                grid=grid,
                in_specs=[
                    # x tiles stream through VMEM (double-buffered by Pallas).
                    pl.BlockSpec((bm, num_inputs), lambda i: (i, 0)),
                    # Weights pinned to block (0, 0): VMEM-resident across all
                    # tiles; single-buffered since their block never changes.
                    pl.BlockSpec((num_inputs, num_hidden), lambda i: (0, 0), **w_kwargs),
                    pl.BlockSpec((num_hidden, n_out_pad), lambda i: (0, 0), **w_kwargs),
                ],
                out_specs=pl.BlockSpec((bm, n_out_pad), lambda i: (i, 0)),
            ),
            compiler_params=pltpu.CompilerParams(
                # Batch tiles are independent -> shard across TCs on v7x.
                dimension_semantics=("parallel",),
                vmem_limit_bytes=int(vmem_limit),
            ),
        )

    try:
        out = build(single_buffer_weights=True)(x2d, w1t, w2t)
    except Exception:
        # Fallback for jax versions where pipeline_mode single-buffering is not
        # supported on TPU: identical semantics with default double-buffering.
        out = build(single_buffer_weights=False)(x2d, w1t, w2t)

    # Strip the lane-dense class padding.
    return out[:, :num_outputs]


def _init_linear_weight(key, out_features, in_features):
    # Deterministic init in the spirit of torch.nn.Linear's default
    # (uniform in [-1/sqrt(fan_in), 1/sqrt(fan_in)]).
    bound = 1.0 / jnp.sqrt(jnp.float32(in_features))
    return jax.random.uniform(
        key, (out_features, in_features), dtype=jnp.float32,
        minval=-bound, maxval=bound)


if __name__ == "__main__":
    # Small shapes: X is a batch of 2 "images" of shape (4, 16, 16)
    # -> num_inputs = 4*16*16 = 1024, num_hidden = 128, num_outputs = 10.
    batch, C, H, W = 2, 4, 16, 16
    num_inputs = C * H * W
    num_hidden = 128
    num_outputs = 10

    key = jax.random.PRNGKey(0)
    kx, kw1, kw2 = jax.random.split(key, 3)

    x = jax.random.normal(kx, (batch, C, H, W), dtype=jnp.float32)
    w1 = _init_linear_weight(kw1, num_hidden, num_inputs)   # lin1.weight
    w2 = _init_linear_weight(kw2, num_outputs, num_hidden)  # lin2.weight

    y_pred = mlp_forward(x, w1, w2, activation_type="sigmoid", bias=False)
    y_pred = jax.block_until_ready(y_pred)

    # Reference check in plain JAX (same math as the torch module).
    x2d = x.reshape(-1, num_inputs)
    h_ref = jax.nn.sigmoid(x2d @ w1.T)
    logits_ref = h_ref @ w2.T
    y_ref = jax.nn.softmax(logits_ref, axis=1)

    assert y_pred.shape == (batch, num_outputs)
    assert jnp.allclose(y_pred, y_ref, atol=1e-5, rtol=1e-5)
    assert jnp.allclose(jnp.sum(y_pred, axis=1), 1.0, atol=1e-5)

    print("KERNEL_OK")
</pallas_src>

<mosaic_0001>
module attributes {stable_mosaic.version = 11 : i64} {
  func.func @_mlp_kernel(%arg0: i32, %arg1: memref<8x1024xf32, #tpu.memory_space<vmem>>, %arg2: memref<1024x128xf32, #tpu.memory_space<vmem>>, %arg3: memref<128x128xf32, #tpu.memory_space<vmem>>, %arg4: memref<8x128xf32, #tpu.memory_space<vmem>>) attributes {dimension_semantics = [#tpu.dimension_semantics<parallel>], iteration_bounds = array<i64: 1>, scalar_prefetch = 0 : i64, scratch_operands = 0 : i64, tpu.core_type = #tpu.core_type<tc>, window_params = [{transform_indices = @transform_0, window_bounds = array<i64: 8, 1024>}, {pipeline_mode = #tpu.pipeline_mode<synchronous>, transform_indices = @transform_1, window_bounds = array<i64: 1024, 128>}, {pipeline_mode = #tpu.pipeline_mode<synchronous>, transform_indices = @transform_2, window_bounds = array<i64: 128, 128>}, {transform_indices = @transform_3, window_bounds = array<i64: 8, 128>}]} {
    %c0 = arith.constant 0 : index
    %c0_0 = arith.constant 0 : index
    %0 = vector.load %arg1[%c0, %c0_0] : memref<8x1024xf32, #tpu.memory_space<vmem>>, vector<8x1024xf32>
    %c0_1 = arith.constant 0 : index
    %c0_2 = arith.constant 0 : index
    %1 = vector.load %arg2[%c0_1, %c0_2] : memref<1024x128xf32, #tpu.memory_space<vmem>>, vector<1024x128xf32>
    %cst = arith.constant dense<0.000000e+00> : vector<8x128xf32>
    %2 = tpu.matmul %0, %1, %cst {dimension_numbers = #tpu.dot_dimension_numbers<[1], [0], [0], [1], [0, 0, 1, 1], [], []>} : vector<8x1024xf32>, vector<1024x128xf32>, vector<8x128xf32> -> vector<8x128xf32>
    %3 = arith.negf %2 : vector<8x128xf32>
    %4 = math.exp %3 : vector<8x128xf32>
    %cst_3 = arith.constant 1.000000e+00 : f32
    %5 = vector.broadcast %cst_3 : f32 to vector<8x128xf32>
    %6 = arith.addf %5, %4 : vector<8x128xf32>
    %7 = arith.divf %5, %6 : vector<8x128xf32>
    %c0_4 = arith.constant 0 : index
    %c0_5 = arith.constant 0 : index
    %8 = vector.load %arg3[%c0_4, %c0_5] : memref<128x128xf32, #tpu.memory_space<vmem>>, vector<128x128xf32>
    %cst_6 = arith.constant dense<0.000000e+00> : vector<8x128xf32>
    %9 = tpu.matmul %7, %8, %cst_6 {dimension_numbers = #tpu.dot_dimension_numbers<[1], [0], [0], [1], [0, 0, 1, 1], [], []>} : vector<8x128xf32>, vector<128x128xf32>, vector<8x128xf32> -> vector<8x128xf32>
    %10 = tpu.iota {dimensions = array<i32: 1>} : vector<8x128xi32>
    %c10_i32 = arith.constant 10 : i32
    %11 = vector.broadcast %c10_i32 : i32 to vector<8x128xi32>
    %12 = arith.cmpi slt, %10, %11 : vector<8x128xi32>
    %cst_7 = arith.constant 0xFF800000 : f32
    %13 = vector.broadcast %cst_7 : f32 to vector<8x128xf32>
    %14 = arith.select %12, %9, %13 : vector<8x128xi1>, vector<8x128xf32>
    %cst_8 = arith.constant dense<0xFF800000> : vector<8xf32>
    %15 = vector.multi_reduction <maximumf>, %14, %cst_8 [1] : vector<8x128xf32> to vector<8xf32>
    %16 = vector.shape_cast %15 : vector<8xf32> to vector<8x1xf32>
    %17 = vector.broadcast %16 : vector<8x1xf32> to vector<8x128xf32>
    %18 = arith.subf %14, %17 : vector<8x128xf32>
    %19 = math.exp %18 : vector<8x128xf32>
    %cst_9 = arith.constant dense<0.000000e+00> : vector<8xf32>
    %20 = vector.multi_reduction <add>, %19, %cst_9 [1] : vector<8x128xf32> to vector<8xf32>
    %21 = vector.shape_cast %20 : vector<8xf32> to vector<8x1xf32>
    %22 = tpu.reciprocal %21 : vector<8x1xf32> -> vector<8x1xf32>
    %23 = vector.broadcast %22 : vector<8x1xf32> to vector<8x128xf32>
    %24 = arith.mulf %19, %23 : vector<8x128xf32>
    %c0_10 = arith.constant 0 : index
    %c0_11 = arith.constant 0 : index
    %25 = vector.load %arg4[%c0_10, %c0_11] : memref<8x128xf32, #tpu.memory_space<vmem>>, vector<8x128xf32>
    tpu.vector_store %arg4[%c0_10, %c0_11], %24 {strides = array<i32>} : memref<8x128xf32, #tpu.memory_space<vmem>>, vector<8x128xf32>,
    return
  }
  func.func @transform_0(%arg0: i32) -> (i32, i32) {
    %c0_i32 = arith.constant 0 : i32
    %c0_i32_0 = arith.constant 0 : i32
    return %arg0, %c0_i32 : i32, i32
  }
  func.func @transform_1(%arg0: i32) -> (i32, i32) {
    %c0_i32 = arith.constant 0 : i32
    %c0_i32_0 = arith.constant 0 : i32
    %c0_i32_1 = arith.constant 0 : i32
    return %c0_i32, %c0_i32_0 : i32, i32
  }
  func.func @transform_2(%arg0: i32) -> (i32, i32) {
    %c0_i32 = arith.constant 0 : i32
    %c0_i32_0 = arith.constant 0 : i32
    %c0_i32_1 = arith.constant 0 : i32
    return %c0_i32, %c0_i32_0 : i32, i32
  }
  func.func @transform_3(%arg0: i32) -> (i32, i32) {
    %c0_i32 = arith.constant 0 : i32
    %c0_i32_0 = arith.constant 0 : i32
    return %arg0, %c0_i32 : i32, i32
  }
}

module attributes {stable_mosaic.version = 11 : i64} {
  func.func @_mlp_kernel(%arg0: i32, %arg1: memref<8x1024xf32, #tpu.memory_space<vmem>>, %arg2: memref<1024x128xf32, #tpu.memory_space<vmem>>, %arg3: memref<128x128xf32, #tpu.memory_space<vmem>>, %arg4: memref<8x128xf32, #tpu.memory_space<vmem>>) attributes {dimension_semantics = [#tpu.dimension_semantics<parallel>], iteration_bounds = array<i64: 1>, scalar_prefetch = 0 : i64, scratch_operands = 0 : i64, tpu.core_type = #tpu.core_type<tc>, window_params = [{transform_indices = @transform_0, window_bounds = array<i64: 8, 1024>}, {pipeline_mode = #tpu.pipeline_mode<synchronous>, transform_indices = @transform_1, window_bounds = array<i64: 1024, 128>}, {pipeline_mode = #tpu.pipeline_mode<synchronous>, transform_indices = @transform_2, window_bounds = array<i64: 128, 128>}, {transform_indices = @transform_3, window_bounds = array<i64: 8, 128>}]} {
    %c0 = arith.constant 0 : index
    %c0_0 = arith.constant 0 : index
    %0 = vector.load %arg1[%c0, %c0_0] : memref<8x1024xf32, #tpu.memory_space<vmem>>, vector<8x1024xf32>
    %c0_1 = arith.constant 0 : index
    %c0_2 = arith.constant 0 : index
    %1 = vector.load %arg2[%c0_1, %c0_2] : memref<1024x128xf32, #tpu.memory_space<vmem>>, vector<1024x128xf32>
    %cst = arith.constant dense<0.000000e+00> : vector<8x128xf32>
    %2 = tpu.matmul %0, %1, %cst {dimension_numbers = #tpu.dot_dimension_numbers<[1], [0], [0], [1], [0, 0, 1, 1], [], []>} : vector<8x1024xf32>, vector<1024x128xf32>, vector<8x128xf32> -> vector<8x128xf32>
    %3 = arith.negf %2 : vector<8x128xf32>
    %4 = math.exp %3 : vector<8x128xf32>
    %cst_3 = arith.constant 1.000000e+00 : f32
    %5 = vector.broadcast %cst_3 : f32 to vector<8x128xf32>
    %6 = arith.addf %5, %4 : vector<8x128xf32>
    %7 = arith.divf %5, %6 : vector<8x128xf32>
    %c0_4 = arith.constant 0 : index
    %c0_5 = arith.constant 0 : index
    %8 = vector.load %arg3[%c0_4, %c0_5] : memref<128x128xf32, #tpu.memory_space<vmem>>, vector<128x128xf32>
    %cst_6 = arith.constant dense<0.000000e+00> : vector<8x128xf32>
    %9 = tpu.matmul %7, %8, %cst_6 {dimension_numbers = #tpu.dot_dimension_numbers<[1], [0], [0], [1], [0, 0, 1, 1], [], []>} : vector<8x128xf32>, vector<128x128xf32>, vector<8x128xf32> -> vector<8x128xf32>
    %10 = tpu.iota {dimensions = array<i32: 1>} : vector<8x128xi32>
    %c10_i32 = arith.constant 10 : i32
    %11 = vector.broadcast %c10_i32 : i32 to vector<8x128xi32>
    %12 = arith.cmpi slt, %10, %11 : vector<8x128xi32>
    %cst_7 = arith.constant 0xFF800000 : f32
    %13 = vector.broadcast %cst_7 : f32 to vector<8x128xf32>
    %14 = arith.select %12, %9, %13 : vector<8x128xi1>, vector<8x128xf32>
    %cst_8 = arith.constant dense<0xFF800000> : vector<8xf32>
    %15 = vector.multi_reduction <maximumf>, %14, %cst_8 [1] : vector<8x128xf32> to vector<8xf32>
    %16 = vector.shape_cast %15 : vector<8xf32> to vector<8x1xf32>
    %17 = vector.broadcast %16 : vector<8x1xf32> to vector<8x128xf32>
    %18 = arith.subf %14, %17 : vector<8x128xf32>
    %19 = math.exp %18 : vector<8x128xf32>
    %cst_9 = arith.constant dense<0.000000e+00> : vector<8xf32>
    %20 = vector.multi_reduction <add>, %19, %cst_9 [1] : vector<8x128xf32> to vector<8xf32>
    %21 = vector.shape_cast %20 : vector<8xf32> to vector<8x1xf32>
    %22 = tpu.reciprocal %21 : vector<8x1xf32> -> vector<8x1xf32>
    %23 = vector.broadcast %22 : vector<8x1xf32> to vector<8x128xf32>
    %24 = arith.mulf %19, %23 : vector<8x128xf32>
    %c0_10 = arith.constant 0 : index
    %c0_11 = arith.constant 0 : index
    %25 = vector.load %arg4[%c0_10, %c0_11] : memref<8x128xf32, #tpu.memory_space<vmem>>, vector<8x128xf32>
    tpu.vector_store %arg4[%c0_10, %c0_11], %24 {strides = array<i32>} : memref<8x128xf32, #tpu.memory_space<vmem>>, vector<8x128xf32>,
    return
  }
  func.func @transform_0(%arg0: i32) -> (i32, i32) {
    %c0_i32 = arith.constant 0 : i32
    %c0_i32_0 = arith.constant 0 : i32
    return %arg0, %c0_i32 : i32, i32
  }
  func.func @transform_1(%arg0: i32) -> (i32, i32) {
    %c0_i32 = arith.constant 0 : i32
    %c0_i32_0 = arith.constant 0 : i32
    %c0_i32_1 = arith.constant 0 : i32
    return %c0_i32, %c0_i32_0 : i32, i32
  }
  func.func @transform_2(%arg0: i32) -> (i32, i32) {
    %c0_i32 = arith.constant 0 : i32
    %c0_i32_0 = arith.constant 0 : i32
    %c0_i32_1 = arith.constant 0 : i32
    return %c0_i32, %c0_i32_0 : i32, i32
  }
  func.func @transform_3(%arg0: i32) -> (i32, i32) {
    %c0_i32 = arith.constant 0 : i32
    %c0_i32_0 = arith.constant 0 : i32
    return %arg0, %c0_i32 : i32, i32
  }
}

</mosaic_0001>

<llo_original>
// kernel: tpu_custom_call.1
$region0: #{tpu_custom_call.1}
  #allocation0 [shape = 'u32[]', space=smem, size = 0x4, offset = 0x4, fixed_abs, tag = 'smem constant byte address 0x4 - core index']
  #allocation1 [shape = 'u32[144,128]{1,0:T(1,128)}', space=vmem, size = 0x12000, scoped, tag = 'internal scratch']
  %s0 = inlined_call_operand.hbm [shape: f32[2,1024], index: 0, kind: input, shape index: {}]
  %s1 = inlined_call_operand.hbm [shape: f32[1024,128], index: 1, kind: input, shape index: {}]
  %s2 = inlined_call_operand.hbm [shape: f32[128,128], index: 2, kind: input, shape index: {}]
  %s3 = inlined_call_operand.hbm [shape: f32[2,128], index: 3, kind: output, shape index: {}]
  %s4 = sld [smem:[#allocation0]]
  $region34: #{tpu_custom_call.1} parent=0
    _
  %s6 = ssub.s32 1, %s4
  %s7 = scalar_select 0, %s6, %s4
  $region1: #{tpu_custom_call.1} parent=0
    #allocation2 [shape = 'u8[32768]{0}', space=vmem, size = 0x8000, scoped, tag = 'input window, operand 0, single buffered']
    #allocation3 [shape = 's32[1]{0}', space=sflag, size = 0x4, scoped, tag = 'scoped memory for tpu_custom_call.1']
    #allocation4 [shape = 's32[1]{0}', space=sflag, size = 0x4, scoped, tag = 'scoped memory for tpu_custom_call.1']
    #allocation5 [shape = 'u8[524288]{0}', space=vmem, size = 0x80000, scoped, tag = 'input window, operand 1, single buffered']
    #allocation6 [shape = 's32[1]{0}', space=sflag, size = 0x4, scoped, tag = 'scoped memory for tpu_custom_call.1']
    #allocation7 [shape = 'u8[65536]{0}', space=vmem, size = 0x10000, scoped, tag = 'input window, operand 2, single buffered']
    #allocation8 [shape = 'u8[4096]{0}', space=vmem, size = 0x1000, scoped, tag = 'output window, operand 0, single buffered']
    %8 = vsyncpa [#allocation3], 0
    %9 = vsyncpa [#allocation6], 0
    %10 = vsyncpa [#allocation4], 0
    // Predicated region
    $region2: #{tpu_custom_call.1} parent=1 // pred_check
      _
    $region3: #{tpu_custom_call.1} parent=1 // pred_check_branch
      %12 = sbr.rel (0) target = $region5
    $region4: #{tpu_custom_call.1} parent=1 // pred_region
      %s14 = ssub.s32 1024, 256
      %15 = vsyncadd [#allocation3], %s14
      %s16 = sshll.u32 [#allocation2], 4
      %s17 = int_to_ptr.vmem [resolvable:$true] %s16
      %22 = dma.hbm_to_vmem [thread:$0]  %s0, 256, %s17, [#allocation3], 256, 256, 16
    $region5: #{tpu_custom_call.1} parent=1 // pred_fallthru
      _
    // Predicated region
    $region6: #{tpu_custom_call.1} parent=1 // pred_check
      _
    $region7: #{tpu_custom_call.1} parent=1 // pred_check_branch
      %24 = sbr.rel (0) target = $region9
    $region8: #{tpu_custom_call.1} parent=1 // pred_region
      %s26 = ssub.s32 16384, 16384
      %27 = vsyncadd [#allocation6], %s26
      %s28 = sshll.u32 [#allocation5], 4
      %s29 = int_to_ptr.vmem [resolvable:$true] %s28
      %34 = dma.hbm_to_vmem [thread:$0]  %s1, 16384, %s29, [#allocation6], 128, 128, 8
    $region9: #{tpu_custom_call.1} parent=1 // pred_fallthru
      _
    // Predicated region
    $region10: #{tpu_custom_call.1} parent=1 // pred_check
      _
    $region11: #{tpu_custom_call.1} parent=1 // pred_check_branch
      %36 = sbr.rel (0) target = $region13
    $region12: #{tpu_custom_call.1} parent=1 // pred_region
      %s38 = ssub.s32 2048, 2048
      %39 = vsyncadd [#allocation6], %s38
      %s40 = sshll.u32 [#allocation7], 4
      %s41 = int_to_ptr.vmem [resolvable:$true] %s40
      %46 = dma.hbm_to_vmem [thread:$0]  %s2, 2048, %s41, [#allocation6], 128, 128, 8
    $region13: #{tpu_custom_call.1} parent=1 // pred_fallthru
      _
    // Predicated region
    $region14: #{tpu_custom_call.1} parent=1 // pred_check
      _
    $region15: #{tpu_custom_call.1} parent=1 // pred_check_branch
      %48 = sbr.rel (0) target = $region17
    $region16: #{tpu_custom_call.1} parent=1 // pred_region
      %49 = dma.done [#allocation3], 1024
    $region17: #{tpu_custom_call.1} parent=1 // pred_fallthru
      _
    // Predicated region
    $region18: #{tpu_custom_call.1} parent=1 // pred_check
      _
    $region19: #{tpu_custom_call.1} parent=1 // pred_check_branch
      %51 = sbr.rel (0) target = $region21
    $region20: #{tpu_custom_call.1} parent=1 // pred_region
      %52 = dma.done [#allocation6], 16384
    $region21: #{tpu_custom_call.1} parent=1 // pred_fallthru
      _
    // Predicated region
    $region22: #{tpu_custom_call.1} parent=1 // pred_check
      _
    $region23: #{tpu_custom_call.1} parent=1 // pred_check_branch
      %54 = sbr.rel (0) target = $region25
    $region24: #{tpu_custom_call.1} parent=1 // pred_region
      %55 = dma.done [#allocation6], 2048
    $region25: #{tpu_custom_call.1} parent=1 // pred_fallthru
      _
    %v56 = vld [vmem:[#allocation2] sm:$0xff]
    %v57 = vld [vmem:[#allocation2 + $0x8] sm:$0xff]
    %v58 = vld [vmem:[#allocation2 + $0x10] sm:$0xff]
    %v59 = vld [vmem:[#allocation2 + $0x18] sm:$0xff]
    %v60 = vld [vmem:[#allocation2 + $0x20] sm:$0xff]
    %v61 = vld [vmem:[#allocation2 + $0x28] sm:$0xff]
    %v62 = vld [vmem:[#allocation2 + $0x30] sm:$0xff]
    %v63 = vld [vmem:[#allocation2 + $0x38] sm:$0xff]
    %v64 = vld [vmem:[#allocation5] sm:$0xff]
    %v65 = vld [vmem:[#allocation5 + $0x8] sm:$0xff]
    %v66 = vld [vmem:[#allocation5 + $0x10] sm:$0xff]
    %v67 = vld [vmem:[#allocation5 + $0x18] sm:$0xff]
    %v68 = vld [vmem:[#allocation5 + $0x20] sm:$0xff]
    %v69 = vld [vmem:[#allocation5 + $0x28] sm:$0xff]
    %v70 = vld [vmem:[#allocation5 + $0x30] sm:$0xff]
    %v71 = vld [vmem:[#allocation5 + $0x38] sm:$0xff]
    %v72 = vld [vmem:[#allocation5 + $0x40] sm:$0xff]
    %v73 = vld [vmem:[#allocation5 + $0x48] sm:$0xff]
    %v74 = vld [vmem:[#allocation5 + $0x50] sm:$0xff]
    %v75 = vld [vmem:[#allocation5 + $0x58] sm:$0xff]
    %v76 = vld [vmem:[#allocation5 + $0x60] sm:$0xff]
    %v77 = vld [vmem:[#allocation5 + $0x68] sm:$0xff]
    %v78 = vld [vmem:[#allocation5 + $0x70] sm:$0xff]
    %v79 = vld [vmem:[#allocation5 + $0x78] sm:$0xff]
    %v80 = vld [vmem:[#allocation5 + $0x80] sm:$0xff]
    %v81 = vld [vmem:[#allocation5 + $0x88] sm:$0xff]
    %v82 = vld [vmem:[#allocation5 + $0x90] sm:$0xff]
    %v83 = vld [vmem:[#allocation5 + $0x98] sm:$0xff]
    %v84 = vld [vmem:[#allocation5 + $0xa0] sm:$0xff]
    %v85 = vld [vmem:[#allocation5 + $0xa8] sm:$0xff]
    %v86 = vld [vmem:[#allocation5 + $0xb0] sm:$0xff]
    %v87 = vld [vmem:[#allocation5 + $0xb8] sm:$0xff]
    %v88 = vld [vmem:[#allocation5 + $0xc0] sm:$0xff]
    %v89 = vld [vmem:[#allocation5 + $0xc8] sm:$0xff]
    %v90 = vld [vmem:[#allocation5 + $0xd0] sm:$0xff]
    %v91 = vld [vmem:[#allocation5 + $0xd8] sm:$0xff]
    %v92 = vld [vmem:[#allocation5 + $0xe0] sm:$0xff]
    %v93 = vld [vmem:[#allocation5 + $0xe8] sm:$0xff]
    %v94 = vld [vmem:[#allocation5 + $0xf0] sm:$0xff]
    %v95 = vld [vmem:[#allocation5 + $0xf8] sm:$0xff]
    %v96 = vld [vmem:[#allocation5 + $0x100] sm:$0xff]
    %v97 = vld [vmem:[#allocation5 + $0x108] sm:$0xff]
    %v98 = vld [vmem:[#allocation5 + $0x110] sm:$0xff]
    %v99 = vld [vmem:[#allocation5 + $0x118] sm:$0xff]
    %v100 = vld [vmem:[#allocation5 + $0x120] sm:$0xff]
    %v101 = vld [vmem:[#allocation5 + $0x128] sm:$0xff]
    %v102 = vld [vmem:[#allocation5 + $0x130] sm:$0xff]
    %v103 = vld [vmem:[#allocation5 + $0x138] sm:$0xff]
    %v104 = vld [vmem:[#allocation5 + $0x140] sm:$0xff]
    %v105 = vld [vmem:[#allocation5 + $0x148] sm:$0xff]
    %v106 = vld [vmem:[#allocation5 + $0x150] sm:$0xff]
    %v107 = vld [vmem:[#allocation5 + $0x158] sm:$0xff]
    %v108 = vld [vmem:[#allocation5 + $0x160] sm:$0xff]
    %v109 = vld [vmem:[#allocation5 + $0x168] sm:$0xff]
    %v110 = vld [vmem:[#allocation5 + $0x170] sm:$0xff]
    %v111 = vld [vmem:[#allocation5 + $0x178] sm:$0xff]
    %v112 = vld [vmem:[#allocation5 + $0x180] sm:$0xff]
    %v113 = vld [vmem:[#allocation5 + $0x188] sm:$0xff]
    %v114 = vld [vmem:[#allocation5 + $0x190] sm:$0xff]
    %v115 = vld [vmem:[#allocation5 + $0x198] sm:$0xff]
    %v116 = vld [vmem:[#allocation5 + $0x1a0] sm:$0xff]
    %v117 = vld [vmem:[#allocation5 + $0x1a8] sm:$0xff]
    %v118 = vld [vmem:[#allocation5 + $0x1b0] sm:$0xff]
    %v119 = vld [vmem:[#allocation5 + $0x1b8] sm:$0xff]
    %v120 = vld [vmem:[#allocation5 + $0x1c0] sm:$0xff]
    %v121 = vld [vmem:[#allocation5 + $0x1c8] sm:$0xff]
    %v122 = vld [vmem:[#allocation5 + $0x1d0] sm:$0xff]
    %v123 = vld [vmem:[#allocation5 + $0x1d8] sm:$0xff]
    %v124 = vld [vmem:[#allocation5 + $0x1e0] sm:$0xff]
    %v125 = vld [vmem:[#allocation5 + $0x1e8] sm:$0xff]
    %v126 = vld [vmem:[#allocation5 + $0x1f0] sm:$0xff]
    %v127 = vld [vmem:[#allocation5 + $0x1f8] sm:$0xff]
    %v128 = vld [vmem:[#allocation5 + $0x200] sm:$0xff]
    %v129 = vld [vmem:[#allocation5 + $0x208] sm:$0xff]
    %v130 = vld [vmem:[#allocation5 + $0x210] sm:$0xff]
    %v131 = vld [vmem:[#allocation5 + $0x218] sm:$0xff]
    %v132 = vld [vmem:[#allocation5 + $0x220] sm:$0xff]
    %v133 = vld [vmem:[#allocation5 + $0x228] sm:$0xff]
    %v134 = vld [vmem:[#allocation5 + $0x230] sm:$0xff]
    %v135 = vld [vmem:[#allocation5 + $0x238] sm:$0xff]
    %v136 = vld [vmem:[#allocation5 + $0x240] sm:$0xff]
    %v137 = vld [vmem:[#allocation5 + $0x248] sm:$0xff]
    %v138 = vld [vmem:[#allocation5 + $0x250] sm:$0xff]
    %v139 = vld [vmem:[#allocation5 + $0x258] sm:$0xff]
    %v140 = vld [vmem:[#allocation5 + $0x260] sm:$0xff]
    %v141 = vld [vmem:[#allocation5 + $0x268] sm:$0xff]
    %v142 = vld [vmem:[#allocation5 + $0x270] sm:$0xff]
    %v143 = vld [vmem:[#allocation5 + $0x278] sm:$0xff]
    %v144 = vld [vmem:[#allocation5 + $0x280] sm:$0xff]
    %v145 = vld [vmem:[#allocation5 + $0x288] sm:$0xff]
    %v146 = vld [vmem:[#allocation5 + $0x290] sm:$0xff]
    %v147 = vld [vmem:[#allocation5 + $0x298] sm:$0xff]
    %v148 = vld [vmem:[#allocation5 + $0x2a0] sm:$0xff]
    %v149 = vld [vmem:[#allocation5 + $0x2a8] sm:$0xff]
    %v150 = vld [vmem:[#allocation5 + $0x2b0] sm:$0xff]
    %v151 = vld [vmem:[#allocation5 + $0x2b8] sm:$0xff]
    %v152 = vld [vmem:[#allocation5 + $0x2c0] sm:$0xff]
    %v153 = vld [vmem:[#allocation5 + $0x2c8] sm:$0xff]
    %v154 = vld [vmem:[#allocation5 + $0x2d0] sm:$0xff]
    %v155 = vld [vmem:[#allocation5 + $0x2d8] sm:$0xff]
    %v156 = vld [vmem:[#allocation5 + $0x2e0] sm:$0xff]
    %v157 = vld [vmem:[#allocation5 + $0x2e8] sm:$0xff]
    %v158 = vld [vmem:[#allocation5 + $0x2f0] sm:$0xff]
    %v159 = vld [vmem:[#allocation5 + $0x2f8] sm:$0xff]
    %v160 = vld [vmem:[#allocation5 + $0x300] sm:$0xff]
    %v161 = vld [vmem:[#allocation5 + $0x308] sm:$0xff]
    %v162 = vld [vmem:[#allocation5 + $0x310] sm:$0xff]
    %v163 = vld [vmem:[#allocation5 + $0x318] sm:$0xff]
    %v164 = vld [vmem:[#allocation5 + $0x320] sm:$0xff]
    %v165 = vld [vmem:[#allocation5 + $0x328] sm:$0xff]
    %v166 = vld [vmem:[#allocation5 + $0x330] sm:$0xff]
    %v167 = vld [vmem:[#allocation5 + $0x338] sm:$0xff]
    %v168 = vld [vmem:[#allocation5 + $0x340] sm:$0xff]
    %v169 = vld [vmem:[#allocation5 + $0x348] sm:$0xff]
    %v170 = vld [vmem:[#allocation5 + $0x350] sm:$0xff]
    %v171 = vld [vmem:[#allocation5 + $0x358] sm:$0xff]
    %v172 = vld [vmem:[#allocation5 + $0x360] sm:$0xff]
    %v173 = vld [vmem:[#allocation5 + $0x368] sm:$0xff]
    %v174 = vld [vmem:[#allocation5 + $0x370] sm:$0xff]
    %v175 = vld [vmem:[#allocation5 + $0x378] sm:$0xff]
    %v176 = vld [vmem:[#allocation5 + $0x380] sm:$0xff]
    %v177 = vld [vmem:[#allocation5 + $0x388] sm:$0xff]
    %v178 = vld [vmem:[#allocation5 + $0x390] sm:$0xff]
    %v179 = vld [vmem:[#allocation5 + $0x398] sm:$0xff]
    %v180 = vld [vmem:[#allocation5 + $0x3a0] sm:$0xff]
    %v181 = vld [vmem:[#allocation5 + $0x3a8] sm:$0xff]
    %v182 = vld [vmem:[#allocation5 + $0x3b0] sm:$0xff]
    %v183 = vld [vmem:[#allocation5 + $0x3b8] sm:$0xff]
    %v184 = vld [vmem:[#allocation5 + $0x3c0] sm:$0xff]
    %v185 = vld [vmem:[#allocation5 + $0x3c8] sm:$0xff]
    %v186 = vld [vmem:[#allocation5 + $0x3d0] sm:$0xff]
    %v187 = vld [vmem:[#allocation5 + $0x3d8] sm:$0xff]
    %v188 = vld [vmem:[#allocation5 + $0x3e0] sm:$0xff]
    %v189 = vld [vmem:[#allocation5 + $0x3e8] sm:$0xff]
    %v190 = vld [vmem:[#allocation5 + $0x3f0] sm:$0xff]
    %v191 = vld [vmem:[#allocation5 + $0x3f8] sm:$0xff]
    %v200 = vcombine.low %v56, %v58
    %v201 = vcombine.high %v56, %v58
    %v202 = vcombine.low %v60, %v62
    %v203 = vcombine.high %v60, %v62
    %v205 = vunpack.c.l.s4 1983009808
    %v206 = vunpack.c.0.s8 %v205
    %v207 = vlaneseq
    %v208 = vshrl.u32 %v207, 7
    %v209 = vsub.s32 %v206, %v208
    %v210 = vrot.slane %v200, %v209
    %v212 = vunpack.c.l.s4 1983009808
    %v213 = vunpack.c.0.s8 %v212
    %v214 = vlaneseq
    %v215 = vshrl.u32 %v214, 7
    %v216 = vsub.s32 %v213, %v215
    %v217 = vrot.slane %v201, %v216
    %v219 = vunpack.c.l.s4 1983009808
    %v220 = vunpack.c.0.s8 %v219
    %v221 = vlaneseq
    %v222 = vshrl.u32 %v221, 7
    %v223 = vsub.s32 %v220, %v222
    %v224 = vrot.slane %v202, %v223
    %v226 = vunpack.c.l.s4 1983009808
    %v227 = vunpack.c.0.s8 %v226
    %v228 = vlaneseq
    %v229 = vshrl.u32 %v228, 7
    %v230 = vsub.s32 %v227, %v229
    %v231 = vrot.slane %v203, %v230
    %v232 = vcombine.low %v210, %v224
    %v233 = vcombine.high %v210, %v224
    %v234 = vcombine.low %v217, %v231
    %v235 = vcombine.high %v217, %v231
    %v236 = vcombine.low %v57, %v59
    %v237 = vcombine.high %v57, %v59
    %v238 = vcombine.low %v61, %v63
    %v239 = vcombine.high %v61, %v63
    %v241 = vunpack.c.l.s4 1983009808
    %v242 = vunpack.c.0.s8 %v241
    %v243 = vlaneseq
    %v244 = vshrl.u32 %v243, 7
    %v245 = vsub.s32 %v242, %v244
    %v246 = vrot.slane %v236, %v245
    %v248 = vunpack.c.l.s4 1983009808
    %v249 = vunpack.c.0.s8 %v248
    %v250 = vlaneseq
    %v251 = vshrl.u32 %v250, 7
    %v252 = vsub.s32 %v249, %v251
    %v253 = vrot.slane %v237, %v252
    %v255 = vunpack.c.l.s4 1983009808
    %v256 = vunpack.c.0.s8 %v255
    %v257 = vlaneseq
    %v258 = vshrl.u32 %v257, 7
    %v259 = vsub.s32 %v256, %v258
    %v260 = vrot.slane %v238, %v259
    %v262 = vunpack.c.l.s4 1983009808
    %v263 = vunpack.c.0.s8 %v262
    %v264 = vlaneseq
    %v265 = vshrl.u32 %v264, 7
    %v266 = vsub.s32 %v263, %v265
    %v267 = vrot.slane %v239, %v266
    %v268 = vcombine.low %v246, %v260
    %v269 = vcombine.high %v246, %v260
    %v270 = vcombine.low %v253, %v267
    %v271 = vcombine.high %v253, %v267
    %280 = vmatprep.subr.mxu0 0.0
    %281 = vmatpush1.msra.mxu0 %v64
    %282 = vmatprep.subr.mxu0 0.0
    %283 = vmatpush1.msra.mxu0 %v65
    %284 = vmatprep.subr.mxu0 0.0
    %285 = vmatpush1.msra.mxu0 %v66
    %286 = vmatprep.subr.mxu0 0.0
    %287 = vmatpush1.msra.mxu0 %v67
    %288 = vmatprep.subr.mxu0 0.0
    %289 = vmatpush1.msra.mxu0 %v68
    %290 = vmatprep.subr.mxu0 0.0
    %291 = vmatpush1.msra.mxu0 %v69
    %292 = vmatprep.subr.mxu0 0.0
    %293 = vmatpush1.msra.mxu0 %v70
    %294 = vmatprep.subr.mxu0 0.0
    %295 = vmatpush1.msra.mxu0 %v71
    %296 = vmatprep.subr.mxu0 0.0
    %297 = vmatpush1.msra.mxu0 %v72
    %298 = vmatprep.subr.mxu0 0.0
    %299 = vmatpush1.msra.mxu0 %v73
    %300 = vmatprep.subr.mxu0 0.0
    %301 = vmatpush1.msra.mxu0 %v74
    %302 = vmatprep.subr.mxu0 0.0
    %303 = vmatpush1.msra.mxu0 %v75
    %304 = vmatprep.subr.mxu0 0.0
    %305 = vmatpush1.msra.mxu0 %v76
    %306 = vmatprep.subr.mxu0 0.0
    %307 = vmatpush1.msra.mxu0 %v77
    %308 = vmatprep.subr.mxu0 0.0
    %309 = vmatpush1.msra.mxu0 %v78
    %310 = vmatprep.subr.mxu0 0.0
    %311 = vmatpush1.msra.mxu0 %v79
    %312 = vmatprep.subr.mxu0 0.0
    %313 = vmatpush1.msra.mxu0 %v80
    %314 = vmatprep.subr.mxu0 0.0
    %315 = vmatpush1.msra.mxu0 %v81
    %316 = vmatprep.subr.mxu0 0.0
    %317 = vmatpush1.msra.mxu0 %v82
    %318 = vmatprep.subr.mxu0 0.0
    %319 = vmatpush1.msra.mxu0 %v83
    %320 = vmatprep.subr.mxu0 0.0
    %321 = vmatpush1.msra.mxu0 %v84
    %322 = vmatprep.subr.mxu0 0.0
    %323 = vmatpush1.msra.mxu0 %v85
    %324 = vmatprep.subr.mxu0 0.0
    %325 = vmatpush1.msra.mxu0 %v86
    %326 = vmatprep.subr.mxu0 0.0
    %327 = vmatpush1.msra.mxu0 %v87
    %328 = vmatprep.subr.mxu0 0.0
    %329 = vmatpush1.msra.mxu0 %v88
    %330 = vmatprep.subr.mxu0 0.0
    %331 = vmatpush1.msra.mxu0 %v89
    %332 = vmatprep.subr.mxu0 0.0
    %333 = vmatpush1.msra.mxu0 %v90
    %334 = vmatprep.subr.mxu0 0.0
    %335 = vmatpush1.msra.mxu0 %v91
    %336 = vmatprep.subr.mxu0 0.0
    %337 = vmatpush1.msra.mxu0 %v92
    %338 = vmatprep.subr.mxu0 0.0
    %339 = vmatpush1.msra.mxu0 %v93
    %340 = vmatprep.subr.mxu0 0.0
    %341 = vmatpush1.msra.mxu0 %v94
    %342 = vmatprep.subr.mxu0 0.0
    %343 = vmatpush1.msra.mxu0 %v95
    %344 = vmatprep.mubr.f32.mxu0 %v233
    %345 = vmatmul.mubr.f32.gmra.mrb[0].mxu0 %v232
    %v346 = vpop.f32.mrb[0].mxu0
    %v347 = vadd.f32 0.0, %v346
    %v348 = vpop.f32.mrb[0].mxu0
    %349 = vdwg.mxu0
    %350 = vmatprep.subr.mxu0 0.0
    %351 = vmatpush1.msra.mxu0 %v96
    %352 = vmatprep.subr.mxu0 0.0
    %353 = vmatpush1.msra.mxu0 %v97
    %354 = vmatprep.subr.mxu0 0.0
    %355 = vmatpush1.msra.mxu0 %v98
    %356 = vmatprep.subr.mxu0 0.0
    %357 = vmatpush1.msra.mxu0 %v99
    %358 = vmatprep.subr.mxu0 0.0
    %359 = vmatpush1.msra.mxu0 %v100
    %360 = vmatprep.subr.mxu0 0.0
    %361 = vmatpush1.msra.mxu0 %v101
    %362 = vmatprep.subr.mxu0 0.0
    %363 = vmatpush1.msra.mxu0 %v102
    %364 = vmatprep.subr.mxu0 0.0
    %365 = vmatpush1.msra.mxu0 %v103
    %366 = vmatprep.subr.mxu0 0.0
    %367 = vmatpush1.msra.mxu0 %v104
    %368 = vmatprep.subr.mxu0 0.0
    %369 = vmatpush1.msra.mxu0 %v105
    %370 = vmatprep.subr.mxu0 0.0
    %371 = vmatpush1.msra.mxu0 %v106
    %372 = vmatprep.subr.mxu0 0.0
    %373 = vmatpush1.msra.mxu0 %v107
    %374 = vmatprep.subr.mxu0 0.0
    %375 = vmatpush1.msra.mxu0 %v108
    %376 = vmatprep.subr.mxu0 0.0
    %377 = vmatpush1.msra.mxu0 %v109
    %378 = vmatprep.subr.mxu0 0.0
    %379 = vmatpush1.msra.mxu0 %v110
    %380 = vmatprep.subr.mxu0 0.0
    %381 = vmatpush1.msra.mxu0 %v111
    %382 = vmatprep.subr.mxu0 0.0
    %383 = vmatpush1.msra.mxu0 %v112
    %384 = vmatprep.subr.mxu0 0.0
    %385 = vmatpush1.msra.mxu0 %v113
    %386 = vmatprep.subr.mxu0 0.0
    %387 = vmatpush1.msra.mxu0 %v114
    %388 = vmatprep.subr.mxu0 0.0
    %389 = vmatpush1.msra.mxu0 %v115
    %390 = vmatprep.subr.mxu0 0.0
    %391 = vmatpush1.msra.mxu0 %v116
    %392 = vmatprep.subr.mxu0 0.0
    %393 = vmatpush1.msra.mxu0 %v117
    %394 = vmatprep.subr.mxu0 0.0
    %395 = vmatpush1.msra.mxu0 %v118
    %396 = vmatprep.subr.mxu0 0.0
    %397 = vmatpush1.msra.mxu0 %v119
    %398 = vmatprep.subr.mxu0 0.0
    %399 = vmatpush1.msra.mxu0 %v120
    %400 = vmatprep.subr.mxu0 0.0
    %401 = vmatpush1.msra.mxu0 %v121
    %402 = vmatprep.subr.mxu0 0.0
    %403 = vmatpush1.msra.mxu0 %v122
    %404 = vmatprep.subr.mxu0 0.0
    %405 = vmatpush1.msra.mxu0 %v123
    %406 = vmatprep.subr.mxu0 0.0
    %407 = vmatpush1.msra.mxu0 %v124
    %408 = vmatprep.subr.mxu0 0.0
    %409 = vmatpush1.msra.mxu0 %v125
    %410 = vmatprep.subr.mxu0 0.0
    %411 = vmatpush1.msra.mxu0 %v126
    %412 = vmatprep.subr.mxu0 0.0
    %413 = vmatpush1.msra.mxu0 %v127
    %414 = vmatprep.mubr.f32.mxu0 %v235
    %415 = vmatmul.mubr.f32.gmra.mrb[0].mxu0 %v234
    %v416 = vpop.f32.mrb[0].mxu0
    %v417 = vadd.f32 %v347, %v416
    %v418 = vpop.f32.mrb[0].mxu0
    %419 = vdwg.mxu0
    %420 = vmatprep.subr.mxu0 0.0
    %421 = vmatpush1.msra.mxu0 %v128
    %422 = vmatprep.subr.mxu0 0.0
    %423 = vmatpush1.msra.mxu0 %v129
    %424 = vmatprep.subr.mxu0 0.0
    %425 = vmatpush1.msra.mxu0 %v130
    %426 = vmatprep.subr.mxu0 0.0
    %427 = vmatpush1.msra.mxu0 %v131
    %428 = vmatprep.subr.mxu0 0.0
    %429 = vmatpush1.msra.mxu0 %v132
    %430 = vmatprep.subr.mxu0 0.0
    %431 = vmatpush1.msra.mxu0 %v133
    %432 = vmatprep.subr.mxu0 0.0
    %433 = vmatpush1.msra.mxu0 %v134
    %434 = vmatprep.subr.mxu0 0.0
    %435 = vmatpush1.msra.mxu0 %v135
    %436 = vmatprep.subr.mxu0 0.0
    %437 = vmatpush1.msra.mxu0 %v136
    %438 = vmatprep.subr.mxu0 0.0
    %439 = vmatpush1.msra.mxu0 %v137
    %440 = vmatprep.subr.mxu0 0.0
    %441 = vmatpush1.msra.mxu0 %v138
    %442 = vmatprep.subr.mxu0 0.0
    %443 = vmatpush1.msra.mxu0 %v139
    %444 = vmatprep.subr.mxu0 0.0
    %445 = vmatpush1.msra.mxu0 %v140
    %446 = vmatprep.subr.mxu0 0.0
    %447 = vmatpush1.msra.mxu0 %v141
    %448 = vmatprep.subr.mxu0 0.0
    %449 = vmatpush1.msra.mxu0 %v142
    %450 = vmatprep.subr.mxu0 0.0
    %451 = vmatpush1.msra.mxu0 %v143
    %452 = vmatprep.subr.mxu0 0.0
    %453 = vmatpush1.msra.mxu0 %v144
    %454 = vmatprep.subr.mxu0 0.0
    %455 = vmatpush1.msra.mxu0 %v145
    %456 = vmatprep.subr.mxu0 0.0
    %457 = vmatpush1.msra.mxu0 %v146
    %458 = vmatprep.subr.mxu0 0.0
    %459 = vmatpush1.msra.mxu0 %v147
    %460 = vmatprep.subr.mxu0 0.0
    %461 = vmatpush1.msra.mxu0 %v148
    %462 = vmatprep.subr.mxu0 0.0
    %463 = vmatpush1.msra.mxu0 %v149
    %464 = vmatprep.subr.mxu0 0.0
    %465 = vmatpush1.msra.mxu0 %v150
    %466 = vmatprep.subr.mxu0 0.0
    %467 = vmatpush1.msra.mxu0 %v151
    %468 = vmatprep.subr.mxu0 0.0
    %469 = vmatpush1.msra.mxu0 %v152
    %470 = vmatprep.subr.mxu0 0.0
    %471 = vmatpush1.msra.mxu0 %v153
    %472 = vmatprep.subr.mxu0 0.0
    %473 = vmatpush1.msra.mxu0 %v154
    %474 = vmatprep.subr.mxu0 0.0
    %475 = vmatpush1.msra.mxu0 %v155
    %476 = vmatprep.subr.mxu0 0.0
    %477 = vmatpush1.msra.mxu0 %v156
    %478 = vmatprep.subr.mxu0 0.0
    %479 = vmatpush1.msra.mxu0 %v157
    %480 = vmatprep.subr.mxu0 0.0
    %481 = vmatpush1.msra.mxu0 %v158
    %482 = vmatprep.subr.mxu0 0.0
    %483 = vmatpush1.msra.mxu0 %v159
    %484 = vmatprep.mubr.f32.mxu0 %v269
    %485 = vmatmul.mubr.f32.gmra.mrb[0].mxu0 %v268
    %v486 = vpop.f32.mrb[0].mxu0
    %v487 = vadd.f32 %v417, %v486
    %v488 = vpop.f32.mrb[0].mxu0
    %489 = vdwg.mxu0
    %490 = vmatprep.subr.mxu0 0.0
    %491 = vmatpush1.msra.mxu0 %v160
    %492 = vmatprep.subr.mxu0 0.0
    %493 = vmatpush1.msra.mxu0 %v161
    %494 = vmatprep.subr.mxu0 0.0
    %495 = vmatpush1.msra.mxu0 %v162
    %496 = vmatprep.subr.mxu0 0.0
    %497 = vmatpush1.msra.mxu0 %v163
    %498 = vmatprep.subr.mxu0 0.0
    %499 = vmatpush1.msra.mxu0 %v164
    %500 = vmatprep.subr.mxu0 0.0
    %501 = vmatpush1.msra.mxu0 %v165
    %502 = vmatprep.subr.mxu0 0.0
    %503 = vmatpush1.msra.mxu0 %v166
    %504 = vmatprep.subr.mxu0 0.0
    %505 = vmatpush1.msra.mxu0 %v167
    %506 = vmatprep.subr.mxu0 0.0
    %507 = vmatpush1.msra.mxu0 %v168
    %508 = vmatprep.subr.mxu0 0.0
    %509 = vmatpush1.msra.mxu0 %v169
    %510 = vmatprep.subr.mxu0 0.0
    %511 = vmatpush1.msra.mxu0 %v170
    %512 = vmatprep.subr.mxu0 0.0
    %513 = vmatpush1.msra.mxu0 %v171
    %514 = vmatprep.subr.mxu0 0.0
    %515 = vmatpush1.msra.mxu0 %v172
    %516 = vmatprep.subr.mxu0 0.0
    %517 = vmatpush1.msra.mxu0 %v173
    %518 = vmatprep.subr.mxu0 0.0
    %519 = vmatpush1.msra.mxu0 %v174
    %520 = vmatprep.subr.mxu0 0.0
    %521 = vmatpush1.msra.mxu0 %v175
    %522 = vmatprep.subr.mxu0 0.0
    %523 = vmatpush1.msra.mxu0 %v176
    %524 = vmatprep.subr.mxu0 0.0
    %525 = vmatpush1.msra.mxu0 %v177
    %526 = vmatprep.subr.mxu0 0.0
    %527 = vmatpush1.msra.mxu0 %v178
    %528 = vmatprep.subr.mxu0 0.0
    %529 = vmatpush1.msra.mxu0 %v179
    %530 = vmatprep.subr.mxu0 0.0
    %531 = vmatpush1.msra.mxu0 %v180
    %532 = vmatprep.subr.mxu0 0.0
    %533 = vmatpush1.msra.mxu0 %v181
    %534 = vmatprep.subr.mxu0 0.0
    %535 = vmatpush1.msra.mxu0 %v182
    %536 = vmatprep.subr.mxu0 0.0
    %537 = vmatpush1.msra.mxu0 %v183
    %538 = vmatprep.subr.mxu0 0.0
    %539 = vmatpush1.msra.mxu0 %v184
    %540 = vmatprep.subr.mxu0 0.0
    %541 = vmatpush1.msra.mxu0 %v185
    %542 = vmatprep.subr.mxu0 0.0
    %543 = vmatpush1.msra.mxu0 %v186
    %544 = vmatprep.subr.mxu0 0.0
    %545 = vmatpush1.msra.mxu0 %v187
    %546 = vmatprep.subr.mxu0 0.0
    %547 = vmatpush1.msra.mxu0 %v188
    %548 = vmatprep.subr.mxu0 0.0
    %549 = vmatpush1.msra.mxu0 %v189
    %550 = vmatprep.subr.mxu0 0.0
    %551 = vmatpush1.msra.mxu0 %v190
    %552 = vmatprep.subr.mxu0 0.0
    %553 = vmatpush1.msra.mxu0 %v191
    %554 = vmatprep.mubr.f32.mxu0 %v271
    %555 = vmatmul.mubr.f32.gmra.mrb[0].mxu0 %v270
    %v556 = vpop.f32.mrb[0].mxu0
    %v557 = vadd.f32 %v487, %v556
    %v558 = vpop.f32.mrb[0].mxu0
    %559 = vdwg.mxu0
    %v560 = vxor.u32 %v557, 2147483648
    %v561 = vmul.f32 %v560, 1.442695
    %v562 = vpow.pop %v561
    %v563 = vadd.f32 %v562, 1.0
    %v564 = vrcp.pop %v563
    %v565 = vmul.f32 1.0, %v564
    %v566 = vld [vmem:[#allocation7] sm:$0xff]
    %v567 = vld [vmem:[#allocation7 + $0x8] sm:$0xff]
    %v568 = vld [vmem:[#allocation7 + $0x10] sm:$0xff]
    %v569 = vld [vmem:[#allocation7 + $0x18] sm:$0xff]
    %v570 = vld [vmem:[#allocation7 + $0x20] sm:$0xff]
    %v571 = vld [vmem:[#allocation7 + $0x28] sm:$0xff]
    %v572 = vld [vmem:[#allocation7 + $0x30] sm:$0xff]
    %v573 = vld [vmem:[#allocation7 + $0x38] sm:$0xff]
    %v574 = vld [vmem:[#allocation7 + $0x40] sm:$0xff]
    %v575 = vld [vmem:[#allocation7 + $0x48] sm:$0xff]
    %v576 = vld [vmem:[#allocation7 + $0x50] sm:$0xff]
    %v577 = vld [vmem:[#allocation7 + $0x58] sm:$0xff]
    %v578 = vld [vmem:[#allocation7 + $0x60] sm:$0xff]
    %v579 = vld [vmem:[#allocation7 + $0x68] sm:$0xff]
    %v580 = vld [vmem:[#allocation7 + $0x70] sm:$0xff]
    %v581 = vld [vmem:[#allocation7 + $0x78] sm:$0xff]
    %582 = vmatprep.subr.mxu0 0.0
    %583 = vmatpush1.msra.mxu0 %v566
    %584 = vmatprep.subr.mxu0 0.0
    %585 = vmatpush1.msra.mxu0 %v567
    %586 = vmatprep.subr.mxu0 0.0
    %587 = vmatpush1.msra.mxu0 %v568
    %588 = vmatprep.subr.mxu0 0.0
    %589 = vmatpush1.msra.mxu0 %v569
    %590 = vmatprep.subr.mxu0 0.0
    %591 = vmatpush1.msra.mxu0 %v570
    %592 = vmatprep.subr.mxu0 0.0
    %593 = vmatpush1.msra.mxu0 %v571
    %594 = vmatprep.subr.mxu0 0.0
    %595 = vmatpush1.msra.mxu0 %v572
    %596 = vmatprep.subr.mxu0 0.0
    %597 = vmatpush1.msra.mxu0 %v573
    %598 = vmatprep.subr.mxu0 0.0
    %599 = vmatpush1.msra.mxu0 %v574
    %600 = vmatprep.subr.mxu0 0.0
    %601 = vmatpush1.msra.mxu0 %v575
    %602 = vmatprep.subr.mxu0 0.0
    %603 = vmatpush1.msra.mxu0 %v576
    %604 = vmatprep.subr.mxu0 0.0
    %605 = vmatpush1.msra.mxu0 %v577
    %606 = vmatprep.subr.mxu0 0.0
    %607 = vmatpush1.msra.mxu0 %v578
    %608 = vmatprep.subr.mxu0 0.0
    %609 = vmatpush1.msra.mxu0 %v579
    %610 = vmatprep.subr.mxu0 0.0
    %611 = vmatpush1.msra.mxu0 %v580
    %612 = vmatprep.subr.mxu0 0.0
    %613 = vmatpush1.msra.mxu0 %v581
    %614 = vmatprep.subr.mxu0 0.0
    %615 = vmatpush1.msra.mxu0 0.0
    %616 = vmatprep.subr.mxu0 0.0
    %617 = vmatpush1.msra.mxu0 0.0
    %618 = vmatprep.subr.mxu0 0.0
    %619 = vmatpush1.msra.mxu0 0.0
    %620 = vmatprep.subr.mxu0 0.0
    %621 = vmatpush1.msra.mxu0 0.0
    %622 = vmatprep.subr.mxu0 0.0
    %623 = vmatpush1.msra.mxu0 0.0
    %624 = vmatprep.subr.mxu0 0.0
    %625 = vmatpush1.msra.mxu0 0.0
    %626 = vmatprep.subr.mxu0 0.0
    %627 = vmatpush1.msra.mxu0 0.0
    %628 = vmatprep.subr.mxu0 0.0
    %629 = vmatpush1.msra.mxu0 0.0
    %630 = vmatprep.subr.mxu0 0.0
    %631 = vmatpush1.msra.mxu0 0.0
    %632 = vmatprep.subr.mxu0 0.0
    %633 = vmatpush1.msra.mxu0 0.0
    %634 = vmatprep.subr.mxu0 0.0
    %635 = vmatpush1.msra.mxu0 0.0
    %636 = vmatprep.subr.mxu0 0.0
    %637 = vmatpush1.msra.mxu0 0.0
    %638 = vmatprep.subr.mxu0 0.0
    %639 = vmatpush1.msra.mxu0 0.0
    %640 = vmatprep.subr.mxu0 0.0
    %641 = vmatpush1.msra.mxu0 0.0
    %642 = vmatprep.subr.mxu0 0.0
    %643 = vmatpush1.msra.mxu0 0.0
    %644 = vmatprep.subr.mxu0 0.0
    %645 = vmatpush1.msra.mxu0 0.0
    %646 = vmatprep.mubr.f32.mxu0 0.0
    %647 = vmatmul.mubr.f32.gmra.mrb[0].mxu0 %v565
    %v648 = vpop.f32.mrb[0].mxu0
    %v649 = vadd.f32 0.0, %v648
    %v650 = vpop.f32.mrb[0].mxu0
    %651 = vdwg.mxu0
    %v652 = vlaneseq
    %v653 = vand.u32 %v652, 127
    %vm654 = vcmp.lt.s32.totalorder %v653, 10
    %v655 = vsel %vm654, %v649, -inf
    %656 = vmax.xlane.f32.xlu0 %v655
    %v657 = vpop.xlane.xlu0 %656
    %v658 = vsub.f32 %v655, %v657
    %v659 = vmul.f32 %v658, 1.442695
    %v660 = vpow.pop %v659
    %661 = vadd.xlane.f32.xlu0 %v660
    %v662 = vpop.xlane.xlu0 %661
    %v663 = vrcp.pop %v662
    %v664 = vmul.f32 %v660, %v663
    %665 = vst [vmem:[#allocation8] sm:$0xff] %v664
    // Predicated region
    $region26: #{tpu_custom_call.1} parent=1 // pred_check
      _
    $region27: #{tpu_custom_call.1} parent=1 // pred_check_branch
      %667 = sbr.rel (0) target = $region29
    $region28: #{tpu_custom_call.1} parent=1 // pred_region
      %s669 = ssub.s32 128, 32
      %670 = vsyncadd [#allocation4], %s669
      %s671 = sshll.u32 [#allocation8], 4
      %s672 = int_to_ptr.vmem [resolvable:$true] %s671
      %677 = dma.vmem_to_hbm [thread:$0]  %s672, 32, %s3, [#allocation4], 32, 32, 2
    $region29: #{tpu_custom_call.1} parent=1 // pred_fallthru
      _
    // Predicated region
    $region30: #{tpu_custom_call.1} parent=1 // pred_check
      _
    $region31: #{tpu_custom_call.1} parent=1 // pred_check_branch
      %679 = sbr.rel (0) target = $region33
    $region32: #{tpu_custom_call.1} parent=1 // pred_region
      %680 = dma.done [#allocation4], 128
    $region33: #{tpu_custom_call.1} parent=1 // pred_fallthru
      _
    %681 = vsyncpa [#allocation3], 1
    %682 = vsyncpa [#allocation6], 1
    %683 = vsyncpa [#allocation4], 1

// kernel: tpu_custom_call.1
$region0: #{tpu_custom_call.1}
  #allocation0 [shape = 'u32[]', space=smem, size = 0x4, offset = 0x4, fixed_abs, tag = 'smem constant byte address 0x4 - core index']
  #allocation1 [shape = 'u32[144,128]{1,0:T(1,128)}', space=vmem, size = 0x12000, scoped, tag = 'internal scratch']
  %s0 = inlined_call_operand.hbm [shape: f32[2,1024], index: 0, kind: input, shape index: {}]
  %s1 = inlined_call_operand.hbm [shape: f32[1024,128], index: 1, kind: input, shape index: {}]
  %s2 = inlined_call_operand.hbm [shape: f32[128,128], index: 2, kind: input, shape index: {}]
  %s3 = inlined_call_operand.hbm [shape: f32[2,128], index: 3, kind: output, shape index: {}]
  %s4 = sld [smem:[#allocation0]]
  $region34: #{tpu_custom_call.1} parent=0
    _
  %s6 = ssub.s32 1, %s4
  %s7 = scalar_select 0, %s6, %s4
  $region1: #{tpu_custom_call.1} parent=0
    #allocation2 [shape = 'u8[32768]{0}', space=vmem, size = 0x8000, scoped, tag = 'input window, operand 0, single buffered']
    #allocation3 [shape = 's32[1]{0}', space=sflag, size = 0x4, scoped, tag = 'scoped memory for tpu_custom_call.1']
    #allocation4 [shape = 's32[1]{0}', space=sflag, size = 0x4, scoped, tag = 'scoped memory for tpu_custom_call.1']
    #allocation5 [shape = 'u8[524288]{0}', space=vmem, size = 0x80000, scoped, tag = 'input window, operand 1, single buffered']
    #allocation6 [shape = 's32[1]{0}', space=sflag, size = 0x4, scoped, tag = 'scoped memory for tpu_custom_call.1']
    #allocation7 [shape = 'u8[65536]{0}', space=vmem, size = 0x10000, scoped, tag = 'input window, operand 2, single buffered']
    #allocation8 [shape = 'u8[4096]{0}', space=vmem, size = 0x1000, scoped, tag = 'output window, operand 0, single buffered']
    %8 = vsyncpa [#allocation3], 0
    %9 = vsyncpa [#allocation6], 0
    %10 = vsyncpa [#allocation4], 0
    // Predicated region
    $region2: #{tpu_custom_call.1} parent=1 // pred_check
      _
    $region3: #{tpu_custom_call.1} parent=1 // pred_check_branch
      %12 = sbr.rel (0) target = $region5
    $region4: #{tpu_custom_call.1} parent=1 // pred_region
      %s14 = ssub.s32 1024, 256
      %15 = vsyncadd [#allocation3], %s14
      %s16 = sshll.u32 [#allocation2], 4
      %s17 = int_to_ptr.vmem [resolvable:$true] %s16
      %22 = dma.hbm_to_vmem [thread:$0]  %s0, 256, %s17, [#allocation3], 256, 256, 16
    $region5: #{tpu_custom_call.1} parent=1 // pred_fallthru
      _
    // Predicated region
    $region6: #{tpu_custom_call.1} parent=1 // pred_check
      _
    $region7: #{tpu_custom_call.1} parent=1 // pred_check_branch
      %24 = sbr.rel (0) target = $region9
    $region8: #{tpu_custom_call.1} parent=1 // pred_region
      %s26 = ssub.s32 16384, 16384
      %27 = vsyncadd [#allocation6], %s26
      %s28 = sshll.u32 [#allocation5], 4
      %s29 = int_to_ptr.vmem [resolvable:$true] %s28
      %34 = dma.hbm_to_vmem [thread:$0]  %s1, 16384, %s29, [#allocation6], 128, 128, 8
    $region9: #{tpu_custom_call.1} parent=1 // pred_fallthru
      _
    // Predicated region
    $region10: #{tpu_custom_call.1} parent=1 // pred_check
      _
    $region11: #{tpu_custom_call.1} parent=1 // pred_check_branch
      %36 = sbr.rel (0) target = $region13
    $region12: #{tpu_custom_call.1} parent=1 // pred_region
      %s38 = ssub.s32 2048, 2048
      %39 = vsyncadd [#allocation6], %s38
      %s40 = sshll.u32 [#allocation7], 4
      %s41 = int_to_ptr.vmem [resolvable:$true] %s40
      %46 = dma.hbm_to_vmem [thread:$0]  %s2, 2048, %s41, [#allocation6], 128, 128, 8
    $region13: #{tpu_custom_call.1} parent=1 // pred_fallthru
      _
    // Predicated region
    $region14: #{tpu_custom_call.1} parent=1 // pred_check
      _
    $region15: #{tpu_custom_call.1} parent=1 // pred_check_branch
      %48 = sbr.rel (0) target = $region17
    $region16: #{tpu_custom_call.1} parent=1 // pred_region
      %49 = dma.done [#allocation3], 1024
    $region17: #{tpu_custom_call.1} parent=1 // pred_fallthru
      _
    // Predicated region
    $region18: #{tpu_custom_call.1} parent=1 // pred_check
      _
    $region19: #{tpu_custom_call.1} parent=1 // pred_check_branch
      %51 = sbr.rel (0) target = $region21
    $region20: #{tpu_custom_call.1} parent=1 // pred_region
      %52 = dma.done [#allocation6], 16384
    $region21: #{tpu_custom_call.1} parent=1 // pred_fallthru
      _
    // Predicated region
    $region22: #{tpu_custom_call.1} parent=1 // pred_check
      _
    $region23: #{tpu_custom_call.1} parent=1 // pred_check_branch
      %54 = sbr.rel (0) target = $region25
    $region24: #{tpu_custom_call.1} parent=1 // pred_region
      %55 = dma.done [#allocation6], 2048
    $region25: #{tpu_custom_call.1} parent=1 // pred_fallthru
      _
    %v56 = vld [vmem:[#allocation2] sm:$0xff]
    %v57 = vld [vmem:[#allocation2 + $0x8] sm:$0xff]
    %v58 = vld [vmem:[#allocation2 + $0x10] sm:$0xff]
    %v59 = vld [vmem:[#allocation2 + $0x18] sm:$0xff]
    %v60 = vld [vmem:[#allocation2 + $0x20] sm:$0xff]
    %v61 = vld [vmem:[#allocation2 + $0x28] sm:$0xff]
    %v62 = vld [vmem:[#allocation2 + $0x30] sm:$0xff]
    %v63 = vld [vmem:[#allocation2 + $0x38] sm:$0xff]
    %v64 = vld [vmem:[#allocation5] sm:$0xff]
    %v65 = vld [vmem:[#allocation5 + $0x8] sm:$0xff]
    %v66 = vld [vmem:[#allocation5 + $0x10] sm:$0xff]
    %v67 = vld [vmem:[#allocation5 + $0x18] sm:$0xff]
    %v68 = vld [vmem:[#allocation5 + $0x20] sm:$0xff]
    %v69 = vld [vmem:[#allocation5 + $0x28] sm:$0xff]
    %v70 = vld [vmem:[#allocation5 + $0x30] sm:$0xff]
    %v71 = vld [vmem:[#allocation5 + $0x38] sm:$0xff]
    %v72 = vld [vmem:[#allocation5 + $0x40] sm:$0xff]
    %v73 = vld [vmem:[#allocation5 + $0x48] sm:$0xff]
    %v74 = vld [vmem:[#allocation5 + $0x50] sm:$0xff]
    %v75 = vld [vmem:[#allocation5 + $0x58] sm:$0xff]
    %v76 = vld [vmem:[#allocation5 + $0x60] sm:$0xff]
    %v77 = vld [vmem:[#allocation5 + $0x68] sm:$0xff]
    %v78 = vld [vmem:[#allocation5 + $0x70] sm:$0xff]
    %v79 = vld [vmem:[#allocation5 + $0x78] sm:$0xff]
    %v80 = vld [vmem:[#allocation5 + $0x80] sm:$0xff]
    %v81 = vld [vmem:[#allocation5 + $0x88] sm:$0xff]
    %v82 = vld [vmem:[#allocation5 + $0x90] sm:$0xff]
    %v83 = vld [vmem:[#allocation5 + $0x98] sm:$0xff]
    %v84 = vld [vmem:[#allocation5 + $0xa0] sm:$0xff]
    %v85 = vld [vmem:[#allocation5 + $0xa8] sm:$0xff]
    %v86 = vld [vmem:[#allocation5 + $0xb0] sm:$0xff]
    %v87 = vld [vmem:[#allocation5 + $0xb8] sm:$0xff]
    %v88 = vld [vmem:[#allocation5 + $0xc0] sm:$0xff]
    %v89 = vld [vmem:[#allocation5 + $0xc8] sm:$0xff]
    %v90 = vld [vmem:[#allocation5 + $0xd0] sm:$0xff]
    %v91 = vld [vmem:[#allocation5 + $0xd8] sm:$0xff]
    %v92 = vld [vmem:[#allocation5 + $0xe0] sm:$0xff]
    %v93 = vld [vmem:[#allocation5 + $0xe8] sm:$0xff]
    %v94 = vld [vmem:[#allocation5 + $0xf0] sm:$0xff]
    %v95 = vld [vmem:[#allocation5 + $0xf8] sm:$0xff]
    %v96 = vld [vmem:[#allocation5 + $0x100] sm:$0xff]
    %v97 = vld [vmem:[#allocation5 + $0x108] sm:$0xff]
    %v98 = vld [vmem:[#allocation5 + $0x110] sm:$0xff]
    %v99 = vld [vmem:[#allocation5 + $0x118] sm:$0xff]
    %v100 = vld [vmem:[#allocation5 + $0x120] sm:$0xff]
    %v101 = vld [vmem:[#allocation5 + $0x128] sm:$0xff]
    %v102 = vld [vmem:[#allocation5 + $0x130] sm:$0xff]
    %v103 = vld [vmem:[#allocation5 + $0x138] sm:$0xff]
    %v104 = vld [vmem:[#allocation5 + $0x140] sm:$0xff]
    %v105 = vld [vmem:[#allocation5 + $0x148] sm:$0xff]
    %v106 = vld [vmem:[#allocation5 + $0x150] sm:$0xff]
    %v107 = vld [vmem:[#allocation5 + $0x158] sm:$0xff]
    %v108 = vld [vmem:[#allocation5 + $0x160] sm:$0xff]
    %v109 = vld [vmem:[#allocation5 + $0x168] sm:$0xff]
    %v110 = vld [vmem:[#allocation5 + $0x170] sm:$0xff]
    %v111 = vld [vmem:[#allocation5 + $0x178] sm:$0xff]
    %v112 = vld [vmem:[#allocation5 + $0x180] sm:$0xff]
    %v113 = vld [vmem:[#allocation5 + $0x188] sm:$0xff]
    %v114 = vld [vmem:[#allocation5 + $0x190] sm:$0xff]
    %v115 = vld [vmem:[#allocation5 + $0x198] sm:$0xff]
    %v116 = vld [vmem:[#allocation5 + $0x1a0] sm:$0xff]
    %v117 = vld [vmem:[#allocation5 + $0x1a8] sm:$0xff]
    %v118 = vld [vmem:[#allocation5 + $0x1b0] sm:$0xff]
    %v119 = vld [vmem:[#allocation5 + $0x1b8] sm:$0xff]
    %v120 = vld [vmem:[#allocation5 + $0x1c0] sm:$0xff]
    %v121 = vld [vmem:[#allocation5 + $0x1c8] sm:$0xff]
    %v122 = vld [vmem:[#allocation5 + $0x1d0] sm:$0xff]
    %v123 = vld [vmem:[#allocation5 + $0x1d8] sm:$0xff]
    %v124 = vld [vmem:[#allocation5 + $0x1e0] sm:$0xff]
    %v125 = vld [vmem:[#allocation5 + $0x1e8] sm:$0xff]
    %v126 = vld [vmem:[#allocation5 + $0x1f0] sm:$0xff]
    %v127 = vld [vmem:[#allocation5 + $0x1f8] sm:$0xff]
    %v128 = vld [vmem:[#allocation5 + $0x200] sm:$0xff]
    %v129 = vld [vmem:[#allocation5 + $0x208] sm:$0xff]
    %v130 = vld [vmem:[#allocation5 + $0x210] sm:$0xff]
    %v131 = vld [vmem:[#allocation5 + $0x218] sm:$0xff]
    %v132 = vld [vmem:[#allocation5 + $0x220] sm:$0xff]
    %v133 = vld [vmem:[#allocation5 + $0x228] sm:$0xff]
    %v134 = vld [vmem:[#allocation5 + $0x230] sm:$0xff]
    %v135 = vld [vmem:[#allocation5 + $0x238] sm:$0xff]
    %v136 = vld [vmem:[#allocation5 + $0x240] sm:$0xff]
    %v137 = vld [vmem:[#allocation5 + $0x248] sm:$0xff]
    %v138 = vld [vmem:[#allocation5 + $0x250] sm:$0xff]
    %v139 = vld [vmem:[#allocation5 + $0x258] sm:$0xff]
    %v140 = vld [vmem:[#allocation5 + $0x260] sm:$0xff]
    %v141 = vld [vmem:[#allocation5 + $0x268] sm:$0xff]
    %v142 = vld [vmem:[#allocation5 + $0x270] sm:$0xff]
    %v143 = vld [vmem:[#allocation5 + $0x278] sm:$0xff]
    %v144 = vld [vmem:[#allocation5 + $0x280] sm:$0xff]
    %v145 = vld [vmem:[#allocation5 + $0x288] sm:$0xff]
    %v146 = vld [vmem:[#allocation5 + $0x290] sm:$0xff]
    %v147 = vld [vmem:[#allocation5 + $0x298] sm:$0xff]
    %v148 = vld [vmem:[#allocation5 + $0x2a0] sm:$0xff]
    %v149 = vld [vmem:[#allocation5 + $0x2a8] sm:$0xff]
    %v150 = vld [vmem:[#allocation5 + $0x2b0] sm:$0xff]
    %v151 = vld [vmem:[#allocation5 + $0x2b8] sm:$0xff]
    %v152 = vld [vmem:[#allocation5 + $0x2c0] sm:$0xff]
    %v153 = vld [vmem:[#allocation5 + $0x2c8] sm:$0xff]
    %v154 = vld [vmem:[#allocation5 + $0x2d0] sm:$0xff]
    %v155 = vld [vmem:[#allocation5 + $0x2d8] sm:$0xff]
    %v156 = vld [vmem:[#allocation5 + $0x2e0] sm:$0xff]
    %v157 = vld [vmem:[#allocation5 + $0x2e8] sm:$0xff]
    %v158 = vld [vmem:[#allocation5 + $0x2f0] sm:$0xff]
    %v159 = vld [vmem:[#allocation5 + $0x2f8] sm:$0xff]
    %v160 = vld [vmem:[#allocation5 + $0x300] sm:$0xff]
    %v161 = vld [vmem:[#allocation5 + $0x308] sm:$0xff]
    %v162 = vld [vmem:[#allocation5 + $0x310] sm:$0xff]
    %v163 = vld [vmem:[#allocation5 + $0x318] sm:$0xff]
    %v164 = vld [vmem:[#allocation5 + $0x320] sm:$0xff]
    %v165 = vld [vmem:[#allocation5 + $0x328] sm:$0xff]
    %v166 = vld [vmem:[#allocation5 + $0x330] sm:$0xff]
    %v167 = vld [vmem:[#allocation5 + $0x338] sm:$0xff]
    %v168 = vld [vmem:[#allocation5 + $0x340] sm:$0xff]
    %v169 = vld [vmem:[#allocation5 + $0x348] sm:$0xff]
    %v170 = vld [vmem:[#allocation5 + $0x350] sm:$0xff]
    %v171 = vld [vmem:[#allocation5 + $0x358] sm:$0xff]
    %v172 = vld [vmem:[#allocation5 + $0x360] sm:$0xff]
    %v173 = vld [vmem:[#allocation5 + $0x368] sm:$0xff]
    %v174 = vld [vmem:[#allocation5 + $0x370] sm:$0xff]
    %v175 = vld [vmem:[#allocation5 + $0x378] sm:$0xff]
    %v176 = vld [vmem:[#allocation5 + $0x380] sm:$0xff]
    %v177 = vld [vmem:[#allocation5 + $0x388] sm:$0xff]
    %v178 = vld [vmem:[#allocation5 + $0x390] sm:$0xff]
    %v179 = vld [vmem:[#allocation5 + $0x398] sm:$0xff]
    %v180 = vld [vmem:[#allocation5 + $0x3a0] sm:$0xff]
    %v181 = vld [vmem:[#allocation5 + $0x3a8] sm:$0xff]
    %v182 = vld [vmem:[#allocation5 + $0x3b0] sm:$0xff]
    %v183 = vld [vmem:[#allocation5 + $0x3b8] sm:$0xff]
    %v184 = vld [vmem:[#allocation5 + $0x3c0] sm:$0xff]
    %v185 = vld [vmem:[#allocation5 + $0x3c8] sm:$0xff]
    %v186 = vld [vmem:[#allocation5 + $0x3d0] sm:$0xff]
    %v187 = vld [vmem:[#allocation5 + $0x3d8] sm:$0xff]
    %v188 = vld [vmem:[#allocation5 + $0x3e0] sm:$0xff]
    %v189 = vld [vmem:[#allocation5 + $0x3e8] sm:$0xff]
    %v190 = vld [vmem:[#allocation5 + $0x3f0] sm:$0xff]
    %v191 = vld [vmem:[#allocation5 + $0x3f8] sm:$0xff]
    %v200 = vcombine.low %v56, %v58
    %v201 = vcombine.high %v56, %v58
    %v202 = vcombine.low %v60, %v62
    %v203 = vcombine.high %v60, %v62
    %v205 = vunpack.c.l.s4 1983009808
    %v206 = vunpack.c.0.s8 %v205
    %v207 = vlaneseq
    %v208 = vshrl.u32 %v207, 7
    %v209 = vsub.s32 %v206, %v208
    %v210 = vrot.slane %v200, %v209
    %v212 = vunpack.c.l.s4 1983009808
    %v213 = vunpack.c.0.s8 %v212
    %v214 = vlaneseq
    %v215 = vshrl.u32 %v214, 7
    %v216 = vsub.s32 %v213, %v215
    %v217 = vrot.slane %v201, %v216
    %v219 = vunpack.c.l.s4 1983009808
    %v220 = vunpack.c.0.s8 %v219
    %v221 = vlaneseq
    %v222 = vshrl.u32 %v221, 7
    %v223 = vsub.s32 %v220, %v222
    %v224 = vrot.slane %v202, %v223
    %v226 = vunpack.c.l.s4 1983009808
    %v227 = vunpack.c.0.s8 %v226
    %v228 = vlaneseq
    %v229 = vshrl.u32 %v228, 7
    %v230 = vsub.s32 %v227, %v229
    %v231 = vrot.slane %v203, %v230
    %v232 = vcombine.low %v210, %v224
    %v233 = vcombine.high %v210, %v224
    %v234 = vcombine.low %v217, %v231
    %v235 = vcombine.high %v217, %v231
    %v236 = vcombine.low %v57, %v59
    %v237 = vcombine.high %v57, %v59
    %v238 = vcombine.low %v61, %v63
    %v239 = vcombine.high %v61, %v63
    %v241 = vunpack.c.l.s4 1983009808
    %v242 = vunpack.c.0.s8 %v241
    %v243 = vlaneseq
    %v244 = vshrl.u32 %v243, 7
    %v245 = vsub.s32 %v242, %v244
    %v246 = vrot.slane %v236, %v245
    %v248 = vunpack.c.l.s4 1983009808
    %v249 = vunpack.c.0.s8 %v248
    %v250 = vlaneseq
    %v251 = vshrl.u32 %v250, 7
    %v252 = vsub.s32 %v249, %v251
    %v253 = vrot.slane %v237, %v252
    %v255 = vunpack.c.l.s4 1983009808
    %v256 = vunpack.c.0.s8 %v255
    %v257 = vlaneseq
    %v258 = vshrl.u32 %v257, 7
    %v259 = vsub.s32 %v256, %v258
    %v260 = vrot.slane %v238, %v259
    %v262 = vunpack.c.l.s4 1983009808
    %v263 = vunpack.c.0.s8 %v262
    %v264 = vlaneseq
    %v265 = vshrl.u32 %v264, 7
    %v266 = vsub.s32 %v263, %v265
    %v267 = vrot.slane %v239, %v266
    %v268 = vcombine.low %v246, %v260
    %v269 = vcombine.high %v246, %v260
    %v270 = vcombine.low %v253, %v267
    %v271 = vcombine.high %v253, %v267
    %280 = vmatprep.subr.mxu0 0.0
    %281 = vmatpush1.msra.mxu0 %v64
    %282 = vmatprep.subr.mxu0 0.0
    %283 = vmatpush1.msra.mxu0 %v65
    %284 = vmatprep.subr.mxu0 0.0
    %285 = vmatpush1.msra.mxu0 %v66
    %286 = vmatprep.subr.mxu0 0.0
    %287 = vmatpush1.msra.mxu0 %v67
    %288 = vmatprep.subr.mxu0 0.0
    %289 = vmatpush1.msra.mxu0 %v68
    %290 = vmatprep.subr.mxu0 0.0
    %291 = vmatpush1.msra.mxu0 %v69
    %292 = vmatprep.subr.mxu0 0.0
    %293 = vmatpush1.msra.mxu0 %v70
    %294 = vmatprep.subr.mxu0 0.0
    %295 = vmatpush1.msra.mxu0 %v71
    %296 = vmatprep.subr.mxu0 0.0
    %297 = vmatpush1.msra.mxu0 %v72
    %298 = vmatprep.subr.mxu0 0.0
    %299 = vmatpush1.msra.mxu0 %v73
    %300 = vmatprep.subr.mxu0 0.0
    %301 = vmatpush1.msra.mxu0 %v74
    %302 = vmatprep.subr.mxu0 0.0
    %303 = vmatpush1.msra.mxu0 %v75
    %304 = vmatprep.subr.mxu0 0.0
    %305 = vmatpush1.msra.mxu0 %v76
    %306 = vmatprep.subr.mxu0 0.0
    %307 = vmatpush1.msra.mxu0 %v77
    %308 = vmatprep.subr.mxu0 0.0
    %309 = vmatpush1.msra.mxu0 %v78
    %310 = vmatprep.subr.mxu0 0.0
    %311 = vmatpush1.msra.mxu0 %v79
    %312 = vmatprep.subr.mxu0 0.0
    %313 = vmatpush1.msra.mxu0 %v80
    %314 = vmatprep.subr.mxu0 0.0
    %315 = vmatpush1.msra.mxu0 %v81
    %316 = vmatprep.subr.mxu0 0.0
    %317 = vmatpush1.msra.mxu0 %v82
    %318 = vmatprep.subr.mxu0 0.0
    %319 = vmatpush1.msra.mxu0 %v83
    %320 = vmatprep.subr.mxu0 0.0
    %321 = vmatpush1.msra.mxu0 %v84
    %322 = vmatprep.subr.mxu0 0.0
    %323 = vmatpush1.msra.mxu0 %v85
    %324 = vmatprep.subr.mxu0 0.0
    %325 = vmatpush1.msra.mxu0 %v86
    %326 = vmatprep.subr.mxu0 0.0
    %327 = vmatpush1.msra.mxu0 %v87
    %328 = vmatprep.subr.mxu0 0.0
    %329 = vmatpush1.msra.mxu0 %v88
    %330 = vmatprep.subr.mxu0 0.0
    %331 = vmatpush1.msra.mxu0 %v89
    %332 = vmatprep.subr.mxu0 0.0
    %333 = vmatpush1.msra.mxu0 %v90
    %334 = vmatprep.subr.mxu0 0.0
    %335 = vmatpush1.msra.mxu0 %v91
    %336 = vmatprep.subr.mxu0 0.0
    %337 = vmatpush1.msra.mxu0 %v92
    %338 = vmatprep.subr.mxu0 0.0
    %339 = vmatpush1.msra.mxu0 %v93
    %340 = vmatprep.subr.mxu0 0.0
    %341 = vmatpush1.msra.mxu0 %v94
    %342 = vmatprep.subr.mxu0 0.0
    %343 = vmatpush1.msra.mxu0 %v95
    %344 = vmatprep.mubr.f32.mxu0 %v233
    %345 = vmatmul.mubr.f32.gmra.mrb[0].mxu0 %v232
    %v346 = vpop.f32.mrb[0].mxu0
    %v347 = vadd.f32 0.0, %v346
    %v348 = vpop.f32.mrb[0].mxu0
    %349 = vdwg.mxu0
    %350 = vmatprep.subr.mxu0 0.0
    %351 = vmatpush1.msra.mxu0 %v96
    %352 = vmatprep.subr.mxu0 0.0
    %353 = vmatpush1.msra.mxu0 %v97
    %354 = vmatprep.subr.mxu0 0.0
    %355 = vmatpush1.msra.mxu0 %v98
    %356 = vmatprep.subr.mxu0 0.0
    %357 = vmatpush1.msra.mxu0 %v99
    %358 = vmatprep.subr.mxu0 0.0
    %359 = vmatpush1.msra.mxu0 %v100
    %360 = vmatprep.subr.mxu0 0.0
    %361 = vmatpush1.msra.mxu0 %v101
    %362 = vmatprep.subr.mxu0 0.0
    %363 = vmatpush1.msra.mxu0 %v102
    %364 = vmatprep.subr.mxu0 0.0
    %365 = vmatpush1.msra.mxu0 %v103
    %366 = vmatprep.subr.mxu0 0.0
    %367 = vmatpush1.msra.mxu0 %v104
    %368 = vmatprep.subr.mxu0 0.0
    %369 = vmatpush1.msra.mxu0 %v105
    %370 = vmatprep.subr.mxu0 0.0
    %371 = vmatpush1.msra.mxu0 %v106
    %372 = vmatprep.subr.mxu0 0.0
    %373 = vmatpush1.msra.mxu0 %v107
    %374 = vmatprep.subr.mxu0 0.0
    %375 = vmatpush1.msra.mxu0 %v108
    %376 = vmatprep.subr.mxu0 0.0
    %377 = vmatpush1.msra.mxu0 %v109
    %378 = vmatprep.subr.mxu0 0.0
    %379 = vmatpush1.msra.mxu0 %v110
    %380 = vmatprep.subr.mxu0 0.0
    %381 = vmatpush1.msra.mxu0 %v111
    %382 = vmatprep.subr.mxu0 0.0
    %383 = vmatpush1.msra.mxu0 %v112
    %384 = vmatprep.subr.mxu0 0.0
    %385 = vmatpush1.msra.mxu0 %v113
    %386 = vmatprep.subr.mxu0 0.0
    %387 = vmatpush1.msra.mxu0 %v114
    %388 = vmatprep.subr.mxu0 0.0
    %389 = vmatpush1.msra.mxu0 %v115
    %390 = vmatprep.subr.mxu0 0.0
    %391 = vmatpush1.msra.mxu0 %v116
    %392 = vmatprep.subr.mxu0 0.0
    %393 = vmatpush1.msra.mxu0 %v117
    %394 = vmatprep.subr.mxu0 0.0
    %395 = vmatpush1.msra.mxu0 %v118
    %396 = vmatprep.subr.mxu0 0.0
    %397 = vmatpush1.msra.mxu0 %v119
    %398 = vmatprep.subr.mxu0 0.0
    %399 = vmatpush1.msra.mxu0 %v120
    %400 = vmatprep.subr.mxu0 0.0
    %401 = vmatpush1.msra.mxu0 %v121
    %402 = vmatprep.subr.mxu0 0.0
    %403 = vmatpush1.msra.mxu0 %v122
    %404 = vmatprep.subr.mxu0 0.0
    %405 = vmatpush1.msra.mxu0 %v123
    %406 = vmatprep.subr.mxu0 0.0
    %407 = vmatpush1.msra.mxu0 %v124
    %408 = vmatprep.subr.mxu0 0.0
    %409 = vmatpush1.msra.mxu0 %v125
    %410 = vmatprep.subr.mxu0 0.0
    %411 = vmatpush1.msra.mxu0 %v126
    %412 = vmatprep.subr.mxu0 0.0
    %413 = vmatpush1.msra.mxu0 %v127
    %414 = vmatprep.mubr.f32.mxu0 %v235
    %415 = vmatmul.mubr.f32.gmra.mrb[0].mxu0 %v234
    %v416 = vpop.f32.mrb[0].mxu0
    %v417 = vadd.f32 %v347, %v416
    %v418 = vpop.f32.mrb[0].mxu0
    %419 = vdwg.mxu0
    %420 = vmatprep.subr.mxu0 0.0
    %421 = vmatpush1.msra.mxu0 %v128
    %422 = vmatprep.subr.mxu0 0.0
    %423 = vmatpush1.msra.mxu0 %v129
    %424 = vmatprep.subr.mxu0 0.0
    %425 = vmatpush1.msra.mxu0 %v130
    %426 = vmatprep.subr.mxu0 0.0
    %427 = vmatpush1.msra.mxu0 %v131
    %428 = vmatprep.subr.mxu0 0.0
    %429 = vmatpush1.msra.mxu0 %v132
    %430 = vmatprep.subr.mxu0 0.0
    %431 = vmatpush1.msra.mxu0 %v133
    %432 = vmatprep.subr.mxu0 0.0
    %433 = vmatpush1.msra.mxu0 %v134
    %434 = vmatprep.subr.mxu0 0.0
    %435 = vmatpush1.msra.mxu0 %v135
    %436 = vmatprep.subr.mxu0 0.0
    %437 = vmatpush1.msra.mxu0 %v136
    %438 = vmatprep.subr.mxu0 0.0
    %439 = vmatpush1.msra.mxu0 %v137
    %440 = vmatprep.subr.mxu0 0.0
    %441 = vmatpush1.msra.mxu0 %v138
    %442 = vmatprep.subr.mxu0 0.0
    %443 = vmatpush1.msra.mxu0 %v139
    %444 = vmatprep.subr.mxu0 0.0
    %445 = vmatpush1.msra.mxu0 %v140
    %446 = vmatprep.subr.mxu0 0.0
    %447 = vmatpush1.msra.mxu0 %v141
    %448 = vmatprep.subr.mxu0 0.0
    %449 = vmatpush1.msra.mxu0 %v142
    %450 = vmatprep.subr.mxu0 0.0
    %451 = vmatpush1.msra.mxu0 %v143
    %452 = vmatprep.subr.mxu0 0.0
    %453 = vmatpush1.msra.mxu0 %v144
    %454 = vmatprep.subr.mxu0 0.0
    %455 = vmatpush1.msra.mxu0 %v145
    %456 = vmatprep.subr.mxu0 0.0
    %457 = vmatpush1.msra.mxu0 %v146
    %458 = vmatprep.subr.mxu0 0.0
    %459 = vmatpush1.msra.mxu0 %v147
    %460 = vmatprep.subr.mxu0 0.0
    %461 = vmatpush1.msra.mxu0 %v148
    %462 = vmatprep.subr.mxu0 0.0
    %463 = vmatpush1.msra.mxu0 %v149
    %464 = vmatprep.subr.mxu0 0.0
    %465 = vmatpush1.msra.mxu0 %v150
    %466 = vmatprep.subr.mxu0 0.0
    %467 = vmatpush1.msra.mxu0 %v151
    %468 = vmatprep.subr.mxu0 0.0
    %469 = vmatpush1.msra.mxu0 %v152
    %470 = vmatprep.subr.mxu0 0.0
    %471 = vmatpush1.msra.mxu0 %v153
    %472 = vmatprep.subr.mxu0 0.0
    %473 = vmatpush1.msra.mxu0 %v154
    %474 = vmatprep.subr.mxu0 0.0
    %475 = vmatpush1.msra.mxu0 %v155
    %476 = vmatprep.subr.mxu0 0.0
    %477 = vmatpush1.msra.mxu0 %v156
    %478 = vmatprep.subr.mxu0 0.0
    %479 = vmatpush1.msra.mxu0 %v157
    %480 = vmatprep.subr.mxu0 0.0
    %481 = vmatpush1.msra.mxu0 %v158
    %482 = vmatprep.subr.mxu0 0.0
    %483 = vmatpush1.msra.mxu0 %v159
    %484 = vmatprep.mubr.f32.mxu0 %v269
    %485 = vmatmul.mubr.f32.gmra.mrb[0].mxu0 %v268
    %v486 = vpop.f32.mrb[0].mxu0
    %v487 = vadd.f32 %v417, %v486
    %v488 = vpop.f32.mrb[0].mxu0
    %489 = vdwg.mxu0
    %490 = vmatprep.subr.mxu0 0.0
    %491 = vmatpush1.msra.mxu0 %v160
    %492 = vmatprep.subr.mxu0 0.0
    %493 = vmatpush1.msra.mxu0 %v161
    %494 = vmatprep.subr.mxu0 0.0
    %495 = vmatpush1.msra.mxu0 %v162
    %496 = vmatprep.subr.mxu0 0.0
    %497 = vmatpush1.msra.mxu0 %v163
    %498 = vmatprep.subr.mxu0 0.0
    %499 = vmatpush1.msra.mxu0 %v164
    %500 = vmatprep.subr.mxu0 0.0
    %501 = vmatpush1.msra.mxu0 %v165
    %502 = vmatprep.subr.mxu0 0.0
    %503 = vmatpush1.msra.mxu0 %v166
    %504 = vmatprep.subr.mxu0 0.0
    %505 = vmatpush1.msra.mxu0 %v167
    %506 = vmatprep.subr.mxu0 0.0
    %507 = vmatpush1.msra.mxu0 %v168
    %508 = vmatprep.subr.mxu0 0.0
    %509 = vmatpush1.msra.mxu0 %v169
    %510 = vmatprep.subr.mxu0 0.0
    %511 = vmatpush1.msra.mxu0 %v170
    %512 = vmatprep.subr.mxu0 0.0
    %513 = vmatpush1.msra.mxu0 %v171
    %514 = vmatprep.subr.mxu0 0.0
    %515 = vmatpush1.msra.mxu0 %v172
    %516 = vmatprep.subr.mxu0 0.0
    %517 = vmatpush1.msra.mxu0 %v173
    %518 = vmatprep.subr.mxu0 0.0
    %519 = vmatpush1.msra.mxu0 %v174
    %520 = vmatprep.subr.mxu0 0.0
    %521 = vmatpush1.msra.mxu0 %v175
    %522 = vmatprep.subr.mxu0 0.0
    %523 = vmatpush1.msra.mxu0 %v176
    %524 = vmatprep.subr.mxu0 0.0
    %525 = vmatpush1.msra.mxu0 %v177
    %526 = vmatprep.subr.mxu0 0.0
    %527 = vmatpush1.msra.mxu0 %v178
    %528 = vmatprep.subr.mxu0 0.0
    %529 = vmatpush1.msra.mxu0 %v179
    %530 = vmatprep.subr.mxu0 0.0
    %531 = vmatpush1.msra.mxu0 %v180
    %532 = vmatprep.subr.mxu0 0.0
    %533 = vmatpush1.msra.mxu0 %v181
    %534 = vmatprep.subr.mxu0 0.0
    %535 = vmatpush1.msra.mxu0 %v182
    %536 = vmatprep.subr.mxu0 0.0
    %537 = vmatpush1.msra.mxu0 %v183
    %538 = vmatprep.subr.mxu0 0.0
    %539 = vmatpush1.msra.mxu0 %v184
    %540 = vmatprep.subr.mxu0 0.0
    %541 = vmatpush1.msra.mxu0 %v185
    %542 = vmatprep.subr.mxu0 0.0
    %543 = vmatpush1.msra.mxu0 %v186
    %544 = vmatprep.subr.mxu0 0.0
    %545 = vmatpush1.msra.mxu0 %v187
    %546 = vmatprep.subr.mxu0 0.0
    %547 = vmatpush1.msra.mxu0 %v188
    %548 = vmatprep.subr.mxu0 0.0
    %549 = vmatpush1.msra.mxu0 %v189
    %550 = vmatprep.subr.mxu0 0.0
    %551 = vmatpush1.msra.mxu0 %v190
    %552 = vmatprep.subr.mxu0 0.0
    %553 = vmatpush1.msra.mxu0 %v191
    %554 = vmatprep.mubr.f32.mxu0 %v271
    %555 = vmatmul.mubr.f32.gmra.mrb[0].mxu0 %v270
    %v556 = vpop.f32.mrb[0].mxu0
    %v557 = vadd.f32 %v487, %v556
    %v558 = vpop.f32.mrb[0].mxu0
    %559 = vdwg.mxu0
    %v560 = vxor.u32 %v557, 2147483648
    %v561 = vmul.f32 %v560, 1.442695
    %v562 = vpow.pop %v561
    %v563 = vadd.f32 %v562, 1.0
    %v564 = vrcp.pop %v563
    %v565 = vmul.f32 1.0, %v564
    %v566 = vld [vmem:[#allocation7] sm:$0xff]
    %v567 = vld [vmem:[#allocation7 + $0x8] sm:$0xff]
    %v568 = vld [vmem:[#allocation7 + $0x10] sm:$0xff]
    %v569 = vld [vmem:[#allocation7 + $0x18] sm:$0xff]
    %v570 = vld [vmem:[#allocation7 + $0x20] sm:$0xff]
    %v571 = vld [vmem:[#allocation7 + $0x28] sm:$0xff]
    %v572 = vld [vmem:[#allocation7 + $0x30] sm:$0xff]
    %v573 = vld [vmem:[#allocation7 + $0x38] sm:$0xff]
    %v574 = vld [vmem:[#allocation7 + $0x40] sm:$0xff]
    %v575 = vld [vmem:[#allocation7 + $0x48] sm:$0xff]
    %v576 = vld [vmem:[#allocation7 + $0x50] sm:$0xff]
    %v577 = vld [vmem:[#allocation7 + $0x58] sm:$0xff]
    %v578 = vld [vmem:[#allocation7 + $0x60] sm:$0xff]
    %v579 = vld [vmem:[#allocation7 + $0x68] sm:$0xff]
    %v580 = vld [vmem:[#allocation7 + $0x70] sm:$0xff]
    %v581 = vld [vmem:[#allocation7 + $0x78] sm:$0xff]
    %582 = vmatprep.subr.mxu0 0.0
    %583 = vmatpush1.msra.mxu0 %v566
    %584 = vmatprep.subr.mxu0 0.0
    %585 = vmatpush1.msra.mxu0 %v567
    %586 = vmatprep.subr.mxu0 0.0
    %587 = vmatpush1.msra.mxu0 %v568
    %588 = vmatprep.subr.mxu0 0.0
    %589 = vmatpush1.msra.mxu0 %v569
    %590 = vmatprep.subr.mxu0 0.0
    %591 = vmatpush1.msra.mxu0 %v570
    %592 = vmatprep.subr.mxu0 0.0
    %593 = vmatpush1.msra.mxu0 %v571
    %594 = vmatprep.subr.mxu0 0.0
    %595 = vmatpush1.msra.mxu0 %v572
    %596 = vmatprep.subr.mxu0 0.0
    %597 = vmatpush1.msra.mxu0 %v573
    %598 = vmatprep.subr.mxu0 0.0
    %599 = vmatpush1.msra.mxu0 %v574
    %600 = vmatprep.subr.mxu0 0.0
    %601 = vmatpush1.msra.mxu0 %v575
    %602 = vmatprep.subr.mxu0 0.0
    %603 = vmatpush1.msra.mxu0 %v576
    %604 = vmatprep.subr.mxu0 0.0
    %605 = vmatpush1.msra.mxu0 %v577
    %606 = vmatprep.subr.mxu0 0.0
    %607 = vmatpush1.msra.mxu0 %v578
    %608 = vmatprep.subr.mxu0 0.0
    %609 = vmatpush1.msra.mxu0 %v579
    %610 = vmatprep.subr.mxu0 0.0
    %611 = vmatpush1.msra.mxu0 %v580
    %612 = vmatprep.subr.mxu0 0.0
    %613 = vmatpush1.msra.mxu0 %v581
    %614 = vmatprep.subr.mxu0 0.0
    %615 = vmatpush1.msra.mxu0 0.0
    %616 = vmatprep.subr.mxu0 0.0
    %617 = vmatpush1.msra.mxu0 0.0
    %618 = vmatprep.subr.mxu0 0.0
    %619 = vmatpush1.msra.mxu0 0.0
    %620 = vmatprep.subr.mxu0 0.0
    %621 = vmatpush1.msra.mxu0 0.0
    %622 = vmatprep.subr.mxu0 0.0
    %623 = vmatpush1.msra.mxu0 0.0
    %624 = vmatprep.subr.mxu0 0.0
    %625 = vmatpush1.msra.mxu0 0.0
    %626 = vmatprep.subr.mxu0 0.0
    %627 = vmatpush1.msra.mxu0 0.0
    %628 = vmatprep.subr.mxu0 0.0
    %629 = vmatpush1.msra.mxu0 0.0
    %630 = vmatprep.subr.mxu0 0.0
    %631 = vmatpush1.msra.mxu0 0.0
    %632 = vmatprep.subr.mxu0 0.0
    %633 = vmatpush1.msra.mxu0 0.0
    %634 = vmatprep.subr.mxu0 0.0
    %635 = vmatpush1.msra.mxu0 0.0
    %636 = vmatprep.subr.mxu0 0.0
    %637 = vmatpush1.msra.mxu0 0.0
    %638 = vmatprep.subr.mxu0 0.0
    %639 = vmatpush1.msra.mxu0 0.0
    %640 = vmatprep.subr.mxu0 0.0
    %641 = vmatpush1.msra.mxu0 0.0
    %642 = vmatprep.subr.mxu0 0.0
    %643 = vmatpush1.msra.mxu0 0.0
    %644 = vmatprep.subr.mxu0 0.0
    %645 = vmatpush1.msra.mxu0 0.0
    %646 = vmatprep.mubr.f32.mxu0 0.0
    %647 = vmatmul.mubr.f32.gmra.mrb[0].mxu0 %v565
    %v648 = vpop.f32.mrb[0].mxu0
    %v649 = vadd.f32 0.0, %v648
    %v650 = vpop.f32.mrb[0].mxu0
    %651 = vdwg.mxu0
    %v652 = vlaneseq
    %v653 = vand.u32 %v652, 127
    %vm654 = vcmp.lt.s32.totalorder %v653, 10
    %v655 = vsel %vm654, %v649, -inf
    %656 = vmax.xlane.f32.xlu0 %v655
    %v657 = vpop.xlane.xlu0 %656
    %v658 = vsub.f32 %v655, %v657
    %v659 = vmul.f32 %v658, 1.442695
    %v660 = vpow.pop %v659
    %661 = vadd.xlane.f32.xlu0 %v660
    %v662 = vpop.xlane.xlu0 %661
    %v663 = vrcp.pop %v662
    %v664 = vmul.f32 %v660, %v663
    %665 = vst [vmem:[#allocation8] sm:$0xff] %v664
    // Predicated region
    $region26: #{tpu_custom_call.1} parent=1 // pred_check
      _
    $region27: #{tpu_custom_call.1} parent=1 // pred_check_branch
      %667 = sbr.rel (0) target = $region29
    $region28: #{tpu_custom_call.1} parent=1 // pred_region
      %s669 = ssub.s32 128, 32
      %670 = vsyncadd [#allocation4], %s669
      %s671 = sshll.u32 [#allocation8], 4
      %s672 = int_to_ptr.vmem [resolvable:$true] %s671
      %677 = dma.vmem_to_hbm [thread:$0]  %s672, 32, %s3, [#allocation4], 32, 32, 2
    $region29: #{tpu_custom_call.1} parent=1 // pred_fallthru
      _
    // Predicated region
    $region30: #{tpu_custom_call.1} parent=1 // pred_check
      _
    $region31: #{tpu_custom_call.1} parent=1 // pred_check_branch
      %679 = sbr.rel (0) target = $region33
    $region32: #{tpu_custom_call.1} parent=1 // pred_region
      %680 = dma.done [#allocation4], 128
    $region33: #{tpu_custom_call.1} parent=1 // pred_fallthru
      _
    %681 = vsyncpa [#allocation3], 1
    %682 = vsyncpa [#allocation6], 1
    %683 = vsyncpa [#allocation4], 1

</llo_original>
